<compile_context>
chip_gen: v7x
topology: tpu7x:2x2x1
jax: 0.10.0
libtpu: 0.0.40
codegen_flags: <defaults>
</compile_context>

<pallas_src>
import math
import functools

import jax
import jax.numpy as jnp
from jax.experimental import pallas as pl
from jax.experimental.pallas import tpu as pltpu

# Row layout of the packed per-layer bias/LayerNorm slab.
_VEC_ROWS = ("bq", "bk", "bv", "bo", "ln1w", "ln1b", "b1", "b2", "ln2w", "ln2b")
# Column-block layout of the packed per-layer matmul-weight slab (each (D, D)).
_W_COLS = ("wq", "wk", "wv", "wo", "w1", "w2")


def _layernorm(h, w, b, eps=1e-5):
    mean = jnp.mean(h, axis=-1, keepdims=True)
    c = h - mean
    var = jnp.mean(c * c, axis=-1, keepdims=True)
    return c * jax.lax.rsqrt(var + eps) * w + b


# --------------------------------- kernel -----------------------------------
def transformer_kernel(x_ref, mask_ref, w_ref, vec_ref, o_ref, *,
                       num_heads, num_layers):
    """All transformer blocks in ONE kernel invocation (no grid).

    x_ref    : (N, D)       f32   token slab (N = B*S)
    mask_ref : (N, N)       f32   additive block-diagonal attention bias (0 / -1e30)
    w_ref    : (L, D, 6D)   bf16  [wq|wk|wv|wo|w1|w2] packed along lanes
    vec_ref  : (L, 10, D)   f32   [bq,bk,bv,bo,ln1w,ln1b,b1,b2,ln2w,ln2b] rows
    o_ref    : (N, D)       f32
    """
    x = x_ref[...]
    mask = mask_ref[...]
    N, D = x.shape
    hd = D // num_heads
    scale = 1.0 / math.sqrt(float(hd))
    bf16 = jnp.bfloat16
    f32 = jnp.float32

    for l in range(num_layers):                   # static, unrolled layer loop
        w = w_ref[l]                              # (D, 6D) bf16, VMEM-resident
        vec = vec_ref[l]                          # (10, D) f32
        bq, bk, bv, bo = vec[0:1], vec[1:2], vec[2:3], vec[3:4]
        ln1w, ln1b = vec[4:5], vec[5:6]
        b1, b2 = vec[6:7], vec[7:8]
        ln2w, ln2b = vec[8:9], vec[9:10]

        xb = x.astype(bf16)                       # one cast reused by QKV + residuals

        # Fused Q|K|V projection: one MXU push instead of three (384 output lanes).
        qkv = jnp.dot(xb, w[:, 0:3 * D], preferred_element_type=f32)   # (N, 3D)
        q = (qkv[:, 0:D] + bq).astype(bf16)       # cast once for the full tensor,
        k = (qkv[:, D:2 * D] + bk).astype(bf16)   # per-head slices below reuse it
        v = (qkv[:, 2 * D:3 * D] + bv).astype(bf16)

        wo = w[:, 3 * D:4 * D]
        att = jnp.zeros((N, D), f32)
        for h in range(num_heads):
            sl = slice(h * hd, (h + 1) * hd)
            s = jax.lax.dot_general(q[:, sl], k[:, sl],
                                    (((1,), (1,)), ((), ())),
                                    preferred_element_type=f32) * scale + mask
            s = s - jnp.max(s, axis=-1, keepdims=True)
            p = jnp.exp(s)
            p = p * pl.reciprocal(jnp.sum(p, axis=-1, keepdims=True), approx=True)
            ah = jnp.dot(p.astype(bf16), v[:, sl], preferred_element_type=f32)
            # Joint (wo) projection folded in per head:
            #   att @ wo == sum_h ah @ wo[h*hd:(h+1)*hd, :]  (no lane concat)
            att = att + jnp.dot(ah.astype(bf16), wo[sl, :],
                                preferred_element_type=f32)

        attended = _layernorm(att + bo + x, ln1w, ln1b)

        # Feed-forward: Linear -> ReLU -> Linear (bf16 MXU, f32 accumulation).
        ff = jnp.dot(attended.astype(bf16), w[:, 4 * D:5 * D],
                     preferred_element_type=f32) + b1
        ff = jnp.maximum(ff, 0.0)
        ff = jnp.dot(ff.astype(bf16), w[:, 5 * D:6 * D],
                     preferred_element_type=f32) + b2

        # Reference Block adds the ORIGINAL block input x here (ff_norm(ff + x)).
        x = _layernorm(ff + x, ln2w, ln2b)
        # TODO(synk): nn.Dropout(p=0.5) sublayers are identity at inference; not modeled.

    o_ref[...] = x


# --------------------------------- wrapper ----------------------------------
def pack_params(layer_params):
    """Pack per-layer param dicts into the two VMEM-resident slabs."""
    w_slab = jnp.stack([
        jnp.concatenate([p[n].astype(jnp.float32) for n in _W_COLS], axis=1)
        for p in layer_params]).astype(jnp.bfloat16)          # (L, D, 6D) bf16
    vec_slab = jnp.stack([
        jnp.concatenate([p[n].astype(jnp.float32) for n in _VEC_ROWS], axis=0)
        for p in layer_params]).astype(jnp.float32)           # (L, 10, D) f32
    return w_slab, vec_slab


def transformer_forward(x, w_slab, vec_slab, num_heads):
    """x: (B, S, D) float32. w_slab: (L, D, 6D) bf16. vec_slab: (L, 10, D) f32."""
    B, S, D = x.shape
    N = B * S
    L = w_slab.shape[0]

    # Block-diagonal additive attention bias, built ONCE host-side (loop-invariant).
    batch_id = jnp.arange(N, dtype=jnp.int32) // S
    mask = jnp.where(batch_id[:, None] == batch_id[None, :],
                     0.0, -1e30).astype(jnp.float32)

    # VMEM residency budget: activations + mask + all-layer weights, single-buffered.
    resident = (w_slab.size * w_slab.dtype.itemsize +
                vec_slab.size * vec_slab.dtype.itemsize +
                2 * N * D * 4 + N * N * 4)
    # v7x has 64 MiB VMEM per TC (v5e/v6e: 128 MiB); keep headroom for scratch.
    assert resident < 48 * 1024 * 1024, (
        "weight-resident path would overflow v7x VMEM; use a layer-streamed grid")
    # TODO(synk): for very large L, fall back to a grid=(L,) layer-streamed path
    # with the packed slabs double-buffered via BlockSpec.
    vmem_limit = int(min(max(32 * 1024 * 1024, 2 * resident + (2 << 20)),
                         60 * 1024 * 1024))

    kernel = functools.partial(transformer_kernel,
                               num_heads=num_heads, num_layers=L)

    flops = L * (12 * N * D * D + 4 * N * N * D)
    transcendentals = L * (num_heads * N * N + num_heads * N + 4 * N)
    bytes_accessed = int(resident)

    out = pl.pallas_call(
        kernel,
        out_shape=jax.ShapeDtypeStruct((N, D), jnp.float32),
        in_specs=[pl.BlockSpec(memory_space=pltpu.MemorySpace.VMEM)] * 4,
        out_specs=pl.BlockSpec(memory_space=pltpu.MemorySpace.VMEM),
        compiler_params=pltpu.CompilerParams(vmem_limit_bytes=vmem_limit),
        cost_estimate=pl.CostEstimate(flops=flops,
                                      transcendentals=transcendentals,
                                      bytes_accessed=bytes_accessed),
    )(x.reshape(N, D), mask, w_slab, vec_slab)
    return out.reshape(B, S, D)


# ------------------------------ parameter init -------------------------------
def init_linear(key, din, dout):
    k1, k2 = jax.random.split(key)
    bound = 1.0 / math.sqrt(din)
    w = jax.random.uniform(k1, (din, dout), jnp.float32, -bound, bound)
    b = jax.random.uniform(k2, (1, dout), jnp.float32, -bound, bound)
    return w, b          # stored f32; packed slab casts weights to bf16


def init_block_params(key, input_size, hidden_size):
    keys = jax.random.split(key, 6)
    wq, bq = init_linear(keys[0], input_size, hidden_size)
    wk, bk = init_linear(keys[1], input_size, hidden_size)
    wv, bv = init_linear(keys[2], input_size, hidden_size)
    wo, bo = init_linear(keys[3], hidden_size, hidden_size)
    w1, b1 = init_linear(keys[4], input_size, hidden_size)   # FF inner = hidden_size
    w2, b2 = init_linear(keys[5], hidden_size, input_size)
    ones = jnp.ones((1, input_size), jnp.float32)
    zeros = jnp.zeros((1, input_size), jnp.float32)
    return dict(wq=wq, bq=bq, wk=wk, bk=bk, wv=wv, bv=bv, wo=wo, bo=bo,
                ln1w=ones, ln1b=zeros, w1=w1, b1=b1, w2=w2, b2=b2,
                ln2w=ones, ln2b=zeros)


# ----------------------------- pure-JAX reference ----------------------------
def block_ref(x, p, num_heads, *, bf16_matmul):
    """bf16_matmul=True mirrors the kernel's (bf16 operand, f32 accum) matmuls;
    bf16_matmul=False is a full-float32 reference (PyTorch semantics)."""
    B, S, D = x.shape
    hd = D // num_heads
    scale = 1.0 / math.sqrt(float(hd))

    if bf16_matmul:
        cast = lambda a: a.astype(jnp.bfloat16)
        kw = dict(preferred_element_type=jnp.float32)
    else:
        cast = lambda a: a.astype(jnp.float32)
        kw = dict(preferred_element_type=jnp.float32,
                  precision=jax.lax.Precision.HIGHEST)
    mm = lambda a, w: jnp.dot(cast(a), cast(w), **kw)

    q = mm(x, p["wq"]) + p["bq"]
    k = mm(x, p["wk"]) + p["bk"]
    v = mm(x, p["wv"]) + p["bv"]
    qh = q.reshape(B, S, num_heads, hd).transpose(0, 2, 1, 3)
    kh = k.reshape(B, S, num_heads, hd).transpose(0, 2, 1, 3)
    vh = v.reshape(B, S, num_heads, hd).transpose(0, 2, 1, 3)
    s = jnp.einsum("bhqd,bhkd->bhqk", cast(qh), cast(kh), **kw) * scale
    s = s - jnp.max(s, axis=-1, keepdims=True)
    e = jnp.exp(s)
    w = e / jnp.sum(e, axis=-1, keepdims=True)
    av = jnp.einsum("bhqk,bhkd->bhqd", cast(w), cast(vh), **kw)
    att = av.transpose(0, 2, 1, 3).reshape(B, S, D)
    attn_out = mm(att, p["wo"]) + p["bo"]
    attended = _layernorm(attn_out + x, p["ln1w"], p["ln1b"])
    ff = jnp.maximum(mm(attended, p["w1"]) + p["b1"], 0.0)
    ff = mm(ff, p["w2"]) + p["b2"]
    return _layernorm(ff + x, p["ln2w"], p["ln2b"])


# ----------------------------------- main ------------------------------------
if __name__ == "__main__":
    # Stage1 config: D = hid_size = 128, 1 block, 4 heads. Small B, S.
    INPUT_SIZE = 128
    HIDDEN_SIZE = 128
    NUM_BLOCKS = 1
    NUM_HEADS = 4
    B, S = 2, 8

    key = jax.random.PRNGKey(0)
    key, xk = jax.random.split(key)
    x = jax.random.normal(xk, (B, S, INPUT_SIZE), jnp.float32)

    layer_params = []
    for _ in range(NUM_BLOCKS):
        key, sub = jax.random.split(key)
        layer_params.append(init_block_params(sub, INPUT_SIZE, HIDDEN_SIZE))

    w_slab, vec_slab = pack_params(layer_params)
    out = jax.block_until_ready(transformer_forward(x, w_slab, vec_slab, NUM_HEADS))

    ref_mixed = x   # precision-matched reference (bf16 operands, f32 accumulate)
    ref_f32 = x     # full float32 reference (PyTorch semantics)
    for p in layer_params:
        ref_mixed = block_ref(ref_mixed, p, NUM_HEADS, bf16_matmul=True)
        ref_f32 = block_ref(ref_f32, p, NUM_HEADS, bf16_matmul=False)
    err_mixed = float(jnp.max(jnp.abs(out - ref_mixed)))
    err_f32 = float(jnp.max(jnp.abs(out - ref_f32)))
    assert err_mixed < 1e-2, f"mismatch vs precision-matched reference: {err_mixed}"
    assert err_f32 < 1e-1, f"mismatch vs float32 reference: {err_f32}"

    # Also exercise the fused multi-layer path (3 stacked blocks, one invocation,
    # all weights VMEM-resident, activation carried in registers/VMEM).
    key, sub = jax.random.split(key)
    lp3 = [init_block_params(k, INPUT_SIZE, HIDDEN_SIZE)
           for k in jax.random.split(sub, 3)]
    w3, v3 = pack_params(lp3)
    out3 = jax.block_until_ready(transformer_forward(x, w3, v3, NUM_HEADS))
    ref3 = x
    for p in lp3:
        ref3 = block_ref(ref3, p, NUM_HEADS, bf16_matmul=True)
    err3 = float(jnp.max(jnp.abs(out3 - ref3)))
    assert err3 < 2e-2, f"fused 3-layer mismatch: {err3}"

    print("KERNEL_OK")
</pallas_src>

<mosaic_0001>
module attributes {stable_mosaic.version = 11 : i64} {
  func.func @transformer_kernel(%arg0: memref<16x128xf32, #tpu.memory_space<vmem>>, %arg1: memref<16x16xf32, #tpu.memory_space<vmem>>, %arg2: memref<1x128x768xbf16, #tpu.memory_space<vmem>>, %arg3: memref<1x10x128xf32, #tpu.memory_space<vmem>>, %arg4: memref<16x128xf32, #tpu.memory_space<vmem>>) attributes {dimension_semantics = [], scalar_prefetch = 0 : i64, scratch_operands = 0 : i64, tpu.core_type = #tpu.core_type<tc>} {
    %c0 = arith.constant 0 : index
    %c0_0 = arith.constant 0 : index
    %0 = vector.load %arg0[%c0, %c0_0] : memref<16x128xf32, #tpu.memory_space<vmem>>, vector<16x128xf32>
    %c0_1 = arith.constant 0 : index
    %c0_2 = arith.constant 0 : index
    %1 = vector.load %arg1[%c0_1, %c0_2] : memref<16x16xf32, #tpu.memory_space<vmem>>, vector<16x16xf32>
    %c0_3 = arith.constant 0 : index
    %c0_4 = arith.constant 0 : index
    %c0_5 = arith.constant 0 : index
    %2 = vector.load %arg2[%c0_3, %c0_4, %c0_5] : memref<1x128x768xbf16, #tpu.memory_space<vmem>>, vector<1x128x768xbf16>
    %3 = vector.shape_cast %2 : vector<1x128x768xbf16> to vector<128x768xbf16>
    %c0_6 = arith.constant 0 : index
    %c0_7 = arith.constant 0 : index
    %c0_8 = arith.constant 0 : index
    %4 = vector.load %arg3[%c0_6, %c0_7, %c0_8] : memref<1x10x128xf32, #tpu.memory_space<vmem>>, vector<1x10x128xf32>
    %5 = vector.shape_cast %4 : vector<1x10x128xf32> to vector<10x128xf32>
    %6 = vector.extract_strided_slice %5 {offsets = [0, 0], sizes = [1, 128], strides = [1, 1]} : vector<10x128xf32> to vector<1x128xf32>
    %7 = vector.extract_strided_slice %5 {offsets = [1, 0], sizes = [1, 128], strides = [1, 1]} : vector<10x128xf32> to vector<1x128xf32>
    %8 = vector.extract_strided_slice %5 {offsets = [2, 0], sizes = [1, 128], strides = [1, 1]} : vector<10x128xf32> to vector<1x128xf32>
    %9 = vector.extract_strided_slice %5 {offsets = [3, 0], sizes = [1, 128], strides = [1, 1]} : vector<10x128xf32> to vector<1x128xf32>
    %10 = vector.extract_strided_slice %5 {offsets = [4, 0], sizes = [1, 128], strides = [1, 1]} : vector<10x128xf32> to vector<1x128xf32>
    %11 = vector.extract_strided_slice %5 {offsets = [5, 0], sizes = [1, 128], strides = [1, 1]} : vector<10x128xf32> to vector<1x128xf32>
    %12 = vector.extract_strided_slice %5 {offsets = [6, 0], sizes = [1, 128], strides = [1, 1]} : vector<10x128xf32> to vector<1x128xf32>
    %13 = vector.extract_strided_slice %5 {offsets = [7, 0], sizes = [1, 128], strides = [1, 1]} : vector<10x128xf32> to vector<1x128xf32>
    %14 = vector.extract_strided_slice %5 {offsets = [8, 0], sizes = [1, 128], strides = [1, 1]} : vector<10x128xf32> to vector<1x128xf32>
    %15 = vector.extract_strided_slice %5 {offsets = [9, 0], sizes = [1, 128], strides = [1, 1]} : vector<10x128xf32> to vector<1x128xf32>
    %16 = arith.truncf %0 : vector<16x128xf32> to vector<16x128xbf16>
    %17 = vector.extract_strided_slice %3 {offsets = [0, 0], sizes = [128, 384], strides = [1, 1]} : vector<128x768xbf16> to vector<128x384xbf16>
    %cst = arith.constant dense<0.000000e+00> : vector<16x384xf32>
    %18 = tpu.matmul %16, %17, %cst {dimension_numbers = #tpu.dot_dimension_numbers<[1], [0], [0], [1], [0, 0, 1, 1], [], []>} : vector<16x128xbf16>, vector<128x384xbf16>, vector<16x384xf32> -> vector<16x384xf32>
    %19 = vector.extract_strided_slice %18 {offsets = [0, 0], sizes = [16, 128], strides = [1, 1]} : vector<16x384xf32> to vector<16x128xf32>
    %20 = vector.broadcast %6 : vector<1x128xf32> to vector<16x128xf32>
    %21 = arith.addf %19, %20 : vector<16x128xf32>
    %22 = arith.truncf %21 : vector<16x128xf32> to vector<16x128xbf16>
    %23 = vector.extract_strided_slice %18 {offsets = [0, 128], sizes = [16, 128], strides = [1, 1]} : vector<16x384xf32> to vector<16x128xf32>
    %24 = vector.broadcast %7 : vector<1x128xf32> to vector<16x128xf32>
    %25 = arith.addf %23, %24 : vector<16x128xf32>
    %26 = arith.truncf %25 : vector<16x128xf32> to vector<16x128xbf16>
    %27 = vector.extract_strided_slice %18 {offsets = [0, 256], sizes = [16, 128], strides = [1, 1]} : vector<16x384xf32> to vector<16x128xf32>
    %28 = vector.broadcast %8 : vector<1x128xf32> to vector<16x128xf32>
    %29 = arith.addf %27, %28 : vector<16x128xf32>
    %30 = arith.truncf %29 : vector<16x128xf32> to vector<16x128xbf16>
    %31 = vector.extract_strided_slice %3 {offsets = [0, 384], sizes = [128, 128], strides = [1, 1]} : vector<128x768xbf16> to vector<128x128xbf16>
    %cst_9 = arith.constant 0.000000e+00 : f32
    %32 = vector.broadcast %cst_9 : f32 to vector<16x128xf32>
    %33 = vector.extract_strided_slice %22 {offsets = [0, 0], sizes = [16, 32], strides = [1, 1]} : vector<16x128xbf16> to vector<16x32xbf16>
    %34 = vector.extract_strided_slice %26 {offsets = [0, 0], sizes = [16, 32], strides = [1, 1]} : vector<16x128xbf16> to vector<16x32xbf16>
    %cst_10 = arith.constant dense<0.000000e+00> : vector<16x16xf32>
    %35 = tpu.matmul %33, %34, %cst_10 {dimension_numbers = #tpu.dot_dimension_numbers<[1], [1], [0], [0], [0, 0, 1, 0], [], []>} : vector<16x32xbf16>, vector<16x32xbf16>, vector<16x16xf32> -> vector<16x16xf32>
    %cst_11 = arith.constant 0.176776692 : f32
    %36 = vector.broadcast %cst_11 : f32 to vector<16x16xf32>
    %37 = arith.mulf %35, %36 : vector<16x16xf32>
    %38 = arith.addf %37, %1 : vector<16x16xf32>
    %cst_12 = arith.constant dense<0xFF800000> : vector<16xf32>
    %39 = vector.multi_reduction <maximumf>, %38, %cst_12 [1] : vector<16x16xf32> to vector<16xf32>
    %40 = vector.shape_cast %39 : vector<16xf32> to vector<16x1xf32>
    %41 = vector.broadcast %40 : vector<16x1xf32> to vector<16x16xf32>
    %42 = arith.subf %38, %41 : vector<16x16xf32>
    %43 = math.exp %42 : vector<16x16xf32>
    %cst_13 = arith.constant dense<0.000000e+00> : vector<16xf32>
    %44 = vector.multi_reduction <add>, %43, %cst_13 [1] : vector<16x16xf32> to vector<16xf32>
    %45 = vector.shape_cast %44 : vector<16xf32> to vector<16x1xf32>
    %46 = tpu.reciprocal %45 {approx = true} : vector<16x1xf32> -> vector<16x1xf32>
    %47 = vector.broadcast %46 : vector<16x1xf32> to vector<16x16xf32>
    %48 = arith.mulf %43, %47 : vector<16x16xf32>
    %49 = arith.truncf %48 : vector<16x16xf32> to vector<16x16xbf16>
    %50 = vector.extract_strided_slice %30 {offsets = [0, 0], sizes = [16, 32], strides = [1, 1]} : vector<16x128xbf16> to vector<16x32xbf16>
    %cst_14 = arith.constant dense<0.000000e+00> : vector<16x32xf32>
    %51 = tpu.matmul %49, %50, %cst_14 {dimension_numbers = #tpu.dot_dimension_numbers<[1], [0], [0], [1], [0, 0, 1, 1], [], []>} : vector<16x16xbf16>, vector<16x32xbf16>, vector<16x32xf32> -> vector<16x32xf32>
    %52 = arith.truncf %51 : vector<16x32xf32> to vector<16x32xbf16>
    %53 = vector.extract_strided_slice %31 {offsets = [0, 0], sizes = [32, 128], strides = [1, 1]} : vector<128x128xbf16> to vector<32x128xbf16>
    %cst_15 = arith.constant dense<0.000000e+00> : vector<16x128xf32>
    %54 = tpu.matmul %52, %53, %cst_15 {dimension_numbers = #tpu.dot_dimension_numbers<[1], [0], [0], [1], [0, 0, 1, 1], [], []>} : vector<16x32xbf16>, vector<32x128xbf16>, vector<16x128xf32> -> vector<16x128xf32>
    %55 = arith.addf %32, %54 : vector<16x128xf32>
    %56 = vector.extract_strided_slice %22 {offsets = [0, 32], sizes = [16, 32], strides = [1, 1]} : vector<16x128xbf16> to vector<16x32xbf16>
    %57 = vector.extract_strided_slice %26 {offsets = [0, 32], sizes = [16, 32], strides = [1, 1]} : vector<16x128xbf16> to vector<16x32xbf16>
    %cst_16 = arith.constant dense<0.000000e+00> : vector<16x16xf32>
    %58 = tpu.matmul %56, %57, %cst_16 {dimension_numbers = #tpu.dot_dimension_numbers<[1], [1], [0], [0], [0, 0, 1, 0], [], []>} : vector<16x32xbf16>, vector<16x32xbf16>, vector<16x16xf32> -> vector<16x16xf32>
    %cst_17 = arith.constant 0.176776692 : f32
    %59 = vector.broadcast %cst_17 : f32 to vector<16x16xf32>
    %60 = arith.mulf %58, %59 : vector<16x16xf32>
    %61 = arith.addf %60, %1 : vector<16x16xf32>
    %cst_18 = arith.constant dense<0xFF800000> : vector<16xf32>
    %62 = vector.multi_reduction <maximumf>, %61, %cst_18 [1] : vector<16x16xf32> to vector<16xf32>
    %63 = vector.shape_cast %62 : vector<16xf32> to vector<16x1xf32>
    %64 = vector.broadcast %63 : vector<16x1xf32> to vector<16x16xf32>
    %65 = arith.subf %61, %64 : vector<16x16xf32>
    %66 = math.exp %65 : vector<16x16xf32>
    %cst_19 = arith.constant dense<0.000000e+00> : vector<16xf32>
    %67 = vector.multi_reduction <add>, %66, %cst_19 [1] : vector<16x16xf32> to vector<16xf32>
    %68 = vector.shape_cast %67 : vector<16xf32> to vector<16x1xf32>
    %69 = tpu.reciprocal %68 {approx = true} : vector<16x1xf32> -> vector<16x1xf32>
    %70 = vector.broadcast %69 : vector<16x1xf32> to vector<16x16xf32>
    %71 = arith.mulf %66, %70 : vector<16x16xf32>
    %72 = arith.truncf %71 : vector<16x16xf32> to vector<16x16xbf16>
    %73 = vector.extract_strided_slice %30 {offsets = [0, 32], sizes = [16, 32], strides = [1, 1]} : vector<16x128xbf16> to vector<16x32xbf16>
    %cst_20 = arith.constant dense<0.000000e+00> : vector<16x32xf32>
    %74 = tpu.matmul %72, %73, %cst_20 {dimension_numbers = #tpu.dot_dimension_numbers<[1], [0], [0], [1], [0, 0, 1, 1], [], []>} : vector<16x16xbf16>, vector<16x32xbf16>, vector<16x32xf32> -> vector<16x32xf32>
    %75 = arith.truncf %74 : vector<16x32xf32> to vector<16x32xbf16>
    %76 = vector.extract_strided_slice %31 {offsets = [32, 0], sizes = [32, 128], strides = [1, 1]} : vector<128x128xbf16> to vector<32x128xbf16>
    %cst_21 = arith.constant dense<0.000000e+00> : vector<16x128xf32>
    %77 = tpu.matmul %75, %76, %cst_21 {dimension_numbers = #tpu.dot_dimension_numbers<[1], [0], [0], [1], [0, 0, 1, 1], [], []>} : vector<16x32xbf16>, vector<32x128xbf16>, vector<16x128xf32> -> vector<16x128xf32>
    %78 = arith.addf %55, %77 : vector<16x128xf32>
    %79 = vector.extract_strided_slice %22 {offsets = [0, 64], sizes = [16, 32], strides = [1, 1]} : vector<16x128xbf16> to vector<16x32xbf16>
    %80 = vector.extract_strided_slice %26 {offsets = [0, 64], sizes = [16, 32], strides = [1, 1]} : vector<16x128xbf16> to vector<16x32xbf16>
    %cst_22 = arith.constant dense<0.000000e+00> : vector<16x16xf32>
    %81 = tpu.matmul %79, %80, %cst_22 {dimension_numbers = #tpu.dot_dimension_numbers<[1], [1], [0], [0], [0, 0, 1, 0], [], []>} : vector<16x32xbf16>, vector<16x32xbf16>, vector<16x16xf32> -> vector<16x16xf32>
    %cst_23 = arith.constant 0.176776692 : f32
    %82 = vector.broadcast %cst_23 : f32 to vector<16x16xf32>
    %83 = arith.mulf %81, %82 : vector<16x16xf32>
    %84 = arith.addf %83, %1 : vector<16x16xf32>
    %cst_24 = arith.constant dense<0xFF800000> : vector<16xf32>
    %85 = vector.multi_reduction <maximumf>, %84, %cst_24 [1] : vector<16x16xf32> to vector<16xf32>
    %86 = vector.shape_cast %85 : vector<16xf32> to vector<16x1xf32>
    %87 = vector.broadcast %86 : vector<16x1xf32> to vector<16x16xf32>
    %88 = arith.subf %84, %87 : vector<16x16xf32>
    %89 = math.exp %88 : vector<16x16xf32>
    %cst_25 = arith.constant dense<0.000000e+00> : vector<16xf32>
    %90 = vector.multi_reduction <add>, %89, %cst_25 [1] : vector<16x16xf32> to vector<16xf32>
    %91 = vector.shape_cast %90 : vector<16xf32> to vector<16x1xf32>
    %92 = tpu.reciprocal %91 {approx = true} : vector<16x1xf32> -> vector<16x1xf32>
    %93 = vector.broadcast %92 : vector<16x1xf32> to vector<16x16xf32>
    %94 = arith.mulf %89, %93 : vector<16x16xf32>
    %95 = arith.truncf %94 : vector<16x16xf32> to vector<16x16xbf16>
    %96 = vector.extract_strided_slice %30 {offsets = [0, 64], sizes = [16, 32], strides = [1, 1]} : vector<16x128xbf16> to vector<16x32xbf16>
    %cst_26 = arith.constant dense<0.000000e+00> : vector<16x32xf32>
    %97 = tpu.matmul %95, %96, %cst_26 {dimension_numbers = #tpu.dot_dimension_numbers<[1], [0], [0], [1], [0, 0, 1, 1], [], []>} : vector<16x16xbf16>, vector<16x32xbf16>, vector<16x32xf32> -> vector<16x32xf32>
    %98 = arith.truncf %97 : vector<16x32xf32> to vector<16x32xbf16>
    %99 = vector.extract_strided_slice %31 {offsets = [64, 0], sizes = [32, 128], strides = [1, 1]} : vector<128x128xbf16> to vector<32x128xbf16>
    %cst_27 = arith.constant dense<0.000000e+00> : vector<16x128xf32>
    %100 = tpu.matmul %98, %99, %cst_27 {dimension_numbers = #tpu.dot_dimension_numbers<[1], [0], [0], [1], [0, 0, 1, 1], [], []>} : vector<16x32xbf16>, vector<32x128xbf16>, vector<16x128xf32> -> vector<16x128xf32>
    %101 = arith.addf %78, %100 : vector<16x128xf32>
    %102 = vector.extract_strided_slice %22 {offsets = [0, 96], sizes = [16, 32], strides = [1, 1]} : vector<16x128xbf16> to vector<16x32xbf16>
    %103 = vector.extract_strided_slice %26 {offsets = [0, 96], sizes = [16, 32], strides = [1, 1]} : vector<16x128xbf16> to vector<16x32xbf16>
    %cst_28 = arith.constant dense<0.000000e+00> : vector<16x16xf32>
    %104 = tpu.matmul %102, %103, %cst_28 {dimension_numbers = #tpu.dot_dimension_numbers<[1], [1], [0], [0], [0, 0, 1, 0], [], []>} : vector<16x32xbf16>, vector<16x32xbf16>, vector<16x16xf32> -> vector<16x16xf32>
    %cst_29 = arith.constant 0.176776692 : f32
    %105 = vector.broadcast %cst_29 : f32 to vector<16x16xf32>
    %106 = arith.mulf %104, %105 : vector<16x16xf32>
    %107 = arith.addf %106, %1 : vector<16x16xf32>
    %cst_30 = arith.constant dense<0xFF800000> : vector<16xf32>
    %108 = vector.multi_reduction <maximumf>, %107, %cst_30 [1] : vector<16x16xf32> to vector<16xf32>
    %109 = vector.shape_cast %108 : vector<16xf32> to vector<16x1xf32>
    %110 = vector.broadcast %109 : vector<16x1xf32> to vector<16x16xf32>
    %111 = arith.subf %107, %110 : vector<16x16xf32>
    %112 = math.exp %111 : vector<16x16xf32>
    %cst_31 = arith.constant dense<0.000000e+00> : vector<16xf32>
    %113 = vector.multi_reduction <add>, %112, %cst_31 [1] : vector<16x16xf32> to vector<16xf32>
    %114 = vector.shape_cast %113 : vector<16xf32> to vector<16x1xf32>
    %115 = tpu.reciprocal %114 {approx = true} : vector<16x1xf32> -> vector<16x1xf32>
    %116 = vector.broadcast %115 : vector<16x1xf32> to vector<16x16xf32>
    %117 = arith.mulf %112, %116 : vector<16x16xf32>
    %118 = arith.truncf %117 : vector<16x16xf32> to vector<16x16xbf16>
    %119 = vector.extract_strided_slice %30 {offsets = [0, 96], sizes = [16, 32], strides = [1, 1]} : vector<16x128xbf16> to vector<16x32xbf16>
    %cst_32 = arith.constant dense<0.000000e+00> : vector<16x32xf32>
    %120 = tpu.matmul %118, %119, %cst_32 {dimension_numbers = #tpu.dot_dimension_numbers<[1], [0], [0], [1], [0, 0, 1, 1], [], []>} : vector<16x16xbf16>, vector<16x32xbf16>, vector<16x32xf32> -> vector<16x32xf32>
    %121 = arith.truncf %120 : vector<16x32xf32> to vector<16x32xbf16>
    %122 = vector.extract_strided_slice %31 {offsets = [96, 0], sizes = [32, 128], strides = [1, 1]} : vector<128x128xbf16> to vector<32x128xbf16>
    %cst_33 = arith.constant dense<0.000000e+00> : vector<16x128xf32>
    %123 = tpu.matmul %121, %122, %cst_33 {dimension_numbers = #tpu.dot_dimension_numbers<[1], [0], [0], [1], [0, 0, 1, 1], [], []>} : vector<16x32xbf16>, vector<32x128xbf16>, vector<16x128xf32> -> vector<16x128xf32>
    %124 = arith.addf %101, %123 : vector<16x128xf32>
    %125 = vector.broadcast %9 : vector<1x128xf32> to vector<16x128xf32>
    %126 = arith.addf %124, %125 : vector<16x128xf32>
    %127 = arith.addf %126, %0 : vector<16x128xf32>
    %cst_34 = arith.constant dense<0.000000e+00> : vector<16xf32>
    %128 = vector.multi_reduction <add>, %127, %cst_34 [1] : vector<16x128xf32> to vector<16xf32>
    %129 = vector.shape_cast %128 : vector<16xf32> to vector<16x1xf32>
    %cst_35 = arith.constant 1.280000e+02 : f32
    %130 = vector.broadcast %cst_35 : f32 to vector<16x1xf32>
    %131 = arith.divf %129, %130 : vector<16x1xf32>
    %132 = vector.broadcast %131 : vector<16x1xf32> to vector<16x128xf32>
    %133 = arith.subf %127, %132 : vector<16x128xf32>
    %134 = arith.mulf %133, %133 : vector<16x128xf32>
    %cst_36 = arith.constant dense<0.000000e+00> : vector<16xf32>
    %135 = vector.multi_reduction <add>, %134, %cst_36 [1] : vector<16x128xf32> to vector<16xf32>
    %136 = vector.shape_cast %135 : vector<16xf32> to vector<16x1xf32>
    %cst_37 = arith.constant 1.280000e+02 : f32
    %137 = vector.broadcast %cst_37 : f32 to vector<16x1xf32>
    %138 = arith.divf %136, %137 : vector<16x1xf32>
    %cst_38 = arith.constant 9.99999974E-6 : f32
    %139 = vector.broadcast %cst_38 : f32 to vector<16x1xf32>
    %140 = arith.addf %138, %139 : vector<16x1xf32>
    %141 = math.rsqrt %140 : vector<16x1xf32>
    %142 = vector.broadcast %141 : vector<16x1xf32> to vector<16x128xf32>
    %143 = arith.mulf %133, %142 : vector<16x128xf32>
    %144 = vector.broadcast %10 : vector<1x128xf32> to vector<16x128xf32>
    %145 = arith.mulf %143, %144 : vector<16x128xf32>
    %146 = vector.broadcast %11 : vector<1x128xf32> to vector<16x128xf32>
    %147 = arith.addf %145, %146 : vector<16x128xf32>
    %148 = arith.truncf %147 : vector<16x128xf32> to vector<16x128xbf16>
    %149 = vector.extract_strided_slice %3 {offsets = [0, 512], sizes = [128, 128], strides = [1, 1]} : vector<128x768xbf16> to vector<128x128xbf16>
    %cst_39 = arith.constant dense<0.000000e+00> : vector<16x128xf32>
    %150 = tpu.matmul %148, %149, %cst_39 {dimension_numbers = #tpu.dot_dimension_numbers<[1], [0], [0], [1], [0, 0, 1, 1], [], []>} : vector<16x128xbf16>, vector<128x128xbf16>, vector<16x128xf32> -> vector<16x128xf32>
    %151 = vector.broadcast %12 : vector<1x128xf32> to vector<16x128xf32>
    %152 = arith.addf %150, %151 : vector<16x128xf32>
    %cst_40 = arith.constant 0.000000e+00 : f32
    %153 = vector.broadcast %cst_40 : f32 to vector<16x128xf32>
    %154 = arith.maximumf %152, %153 : vector<16x128xf32>
    %155 = arith.truncf %154 : vector<16x128xf32> to vector<16x128xbf16>
    %156 = vector.extract_strided_slice %3 {offsets = [0, 640], sizes = [128, 128], strides = [1, 1]} : vector<128x768xbf16> to vector<128x128xbf16>
    %cst_41 = arith.constant dense<0.000000e+00> : vector<16x128xf32>
    %157 = tpu.matmul %155, %156, %cst_41 {dimension_numbers = #tpu.dot_dimension_numbers<[1], [0], [0], [1], [0, 0, 1, 1], [], []>} : vector<16x128xbf16>, vector<128x128xbf16>, vector<16x128xf32> -> vector<16x128xf32>
    %158 = vector.broadcast %13 : vector<1x128xf32> to vector<16x128xf32>
    %159 = arith.addf %157, %158 : vector<16x128xf32>
    %160 = arith.addf %159, %0 : vector<16x128xf32>
    %cst_42 = arith.constant dense<0.000000e+00> : vector<16xf32>
    %161 = vector.multi_reduction <add>, %160, %cst_42 [1] : vector<16x128xf32> to vector<16xf32>
    %162 = vector.shape_cast %161 : vector<16xf32> to vector<16x1xf32>
    %cst_43 = arith.constant 1.280000e+02 : f32
    %163 = vector.broadcast %cst_43 : f32 to vector<16x1xf32>
    %164 = arith.divf %162, %163 : vector<16x1xf32>
    %165 = vector.broadcast %164 : vector<16x1xf32> to vector<16x128xf32>
    %166 = arith.subf %160, %165 : vector<16x128xf32>
    %167 = arith.mulf %166, %166 : vector<16x128xf32>
    %cst_44 = arith.constant dense<0.000000e+00> : vector<16xf32>
    %168 = vector.multi_reduction <add>, %167, %cst_44 [1] : vector<16x128xf32> to vector<16xf32>
    %169 = vector.shape_cast %168 : vector<16xf32> to vector<16x1xf32>
    %cst_45 = arith.constant 1.280000e+02 : f32
    %170 = vector.broadcast %cst_45 : f32 to vector<16x1xf32>
    %171 = arith.divf %169, %170 : vector<16x1xf32>
    %cst_46 = arith.constant 9.99999974E-6 : f32
    %172 = vector.broadcast %cst_46 : f32 to vector<16x1xf32>
    %173 = arith.addf %171, %172 : vector<16x1xf32>
    %174 = math.rsqrt %173 : vector<16x1xf32>
    %175 = vector.broadcast %174 : vector<16x1xf32> to vector<16x128xf32>
    %176 = arith.mulf %166, %175 : vector<16x128xf32>
    %177 = vector.broadcast %14 : vector<1x128xf32> to vector<16x128xf32>
    %178 = arith.mulf %176, %177 : vector<16x128xf32>
    %179 = vector.broadcast %15 : vector<1x128xf32> to vector<16x128xf32>
    %180 = arith.addf %178, %179 : vector<16x128xf32>
    %c0_47 = arith.constant 0 : index
    %c0_48 = arith.constant 0 : index
    %181 = vector.load %arg4[%c0_47, %c0_48] : memref<16x128xf32, #tpu.memory_space<vmem>>, vector<16x128xf32>
    tpu.vector_store %arg4[%c0_47, %c0_48], %180 {strides = array<i32>} : memref<16x128xf32, #tpu.memory_space<vmem>>, vector<16x128xf32>,
    return
  }
}

</mosaic_0001>

<llo_original>
// kernel: tpu_custom_call.1
$region0: #{tpu_custom_call.1}
  #allocation0 [shape = 'u32[]', space=smem, size = 0x4, offset = 0x4, fixed_abs, tag = 'smem constant byte address 0x4 - core index']
  #allocation1 [shape = 'u32[144,128]{1,0:T(1,128)}', space=vmem, size = 0x12000, scoped, tag = 'internal scratch']
  %s0 = inlined_call_operand.vmem [shape: f32[16,128], index: 0, kind: input, shape index: {}]
  %s1 = inlined_call_operand.hbm [shape: f32[16,16], index: 1, kind: input, shape index: {}]
  %s2 = inlined_call_operand.hbm [shape: bf16[1,128,768], index: 2, kind: input, shape index: {}]
  %s3 = inlined_call_operand.vmem [shape: f32[1,10,128], index: 3, kind: input, shape index: {}]
  %s4 = inlined_call_operand.hbm [shape: f32[16,128], index: 4, kind: output, shape index: {}]
  %s5 = sld [smem:[#allocation0]]
  $region34: #{tpu_custom_call.1} parent=0
    _
  %s7 = ssub.s32 1, %s5
  %s8 = scalar_select 0, %s7, %s5
  $region1: #{tpu_custom_call.1} parent=0
    #allocation2 [shape = 'u8[8192]{0}', space=vmem, size = 0x2000, scoped, tag = 'input window, operand 1, single buffered']
    #allocation3 [shape = 's32[1]{0}', space=sflag, size = 0x4, scoped, tag = 'scoped memory for tpu_custom_call.1']
    #allocation4 [shape = 's32[1]{0}', space=sflag, size = 0x4, scoped, tag = 'scoped memory for tpu_custom_call.1']
    #allocation5 [shape = 'u8[196608]{0}', space=vmem, size = 0x30000, scoped, tag = 'input window, operand 2, single buffered']
    #allocation6 [shape = 's32[1]{0}', space=sflag, size = 0x4, scoped, tag = 'scoped memory for tpu_custom_call.1']
    #allocation7 [shape = 'u8[8192]{0}', space=vmem, size = 0x2000, scoped, tag = 'output window, operand 0, single buffered']
    %9 = vsyncpa [#allocation3], 0
    %10 = vsyncpa [#allocation6], 0
    %11 = vsyncpa [#allocation4], 0
    // Predicated region
    $region2: #{tpu_custom_call.1} parent=1 // pred_check
      _
    $region3: #{tpu_custom_call.1} parent=1 // pred_check_branch
      %13 = sbr.rel (0) target = $region5
    $region4: #{tpu_custom_call.1} parent=1 // pred_region
      _
    $region5: #{tpu_custom_call.1} parent=1 // pred_fallthru
      _
    // Predicated region
    $region6: #{tpu_custom_call.1} parent=1 // pred_check
      _
    $region7: #{tpu_custom_call.1} parent=1 // pred_check_branch
      %15 = sbr.rel (0) target = $region9
    $region8: #{tpu_custom_call.1} parent=1 // pred_region
      %s17 = ssub.s32 256, 256
      %18 = vsyncadd [#allocation3], %s17
      %s19 = sshll.u32 [#allocation2], 4
      %s20 = int_to_ptr.vmem [resolvable:$true] %s19
      %25 = dma.hbm_to_vmem [thread:$0]  %s1, 256, %s20, [#allocation3], 128, 128, 8
    $region9: #{tpu_custom_call.1} parent=1 // pred_fallthru
      _
    // Predicated region
    $region10: #{tpu_custom_call.1} parent=1 // pred_check
      _
    $region11: #{tpu_custom_call.1} parent=1 // pred_check_branch
      %27 = sbr.rel (0) target = $region13
    $region12: #{tpu_custom_call.1} parent=1 // pred_region
      %s29 = ssub.s32 6144, 6144
      %30 = vsyncadd [#allocation6], %s29
      %s31 = sshll.u32 [#allocation5], 4
      %s32 = int_to_ptr.vmem [resolvable:$true] %s31
      %37 = dma.hbm_to_vmem [thread:$0]  %s2, 6144, %s32, [#allocation6], 384, 384, 24
    $region13: #{tpu_custom_call.1} parent=1 // pred_fallthru
      _
    // Predicated region
    $region14: #{tpu_custom_call.1} parent=1 // pred_check
      _
    $region15: #{tpu_custom_call.1} parent=1 // pred_check_branch
      %39 = sbr.rel (0) target = $region17
    $region16: #{tpu_custom_call.1} parent=1 // pred_region
      _
    $region17: #{tpu_custom_call.1} parent=1 // pred_fallthru
      _
    // Predicated region
    $region18: #{tpu_custom_call.1} parent=1 // pred_check
      _
    $region19: #{tpu_custom_call.1} parent=1 // pred_check_branch
      %41 = sbr.rel (0) target = $region21
    $region20: #{tpu_custom_call.1} parent=1 // pred_region
      %42 = dma.done [#allocation3], 256
    $region21: #{tpu_custom_call.1} parent=1 // pred_fallthru
      _
    // Predicated region
    $region22: #{tpu_custom_call.1} parent=1 // pred_check
      _
    $region23: #{tpu_custom_call.1} parent=1 // pred_check_branch
      %44 = sbr.rel (0) target = $region25
    $region24: #{tpu_custom_call.1} parent=1 // pred_region
      %45 = dma.done [#allocation6], 6144
    $region25: #{tpu_custom_call.1} parent=1 // pred_fallthru
      _
    %v47 = vld [vmem:[%s0] sm:$0xff]
    %v48 = vld [vmem:[%s0 + $0x8] sm:$0xff]
    %v49 = vld [vmem:[#allocation2] sm:$0xff]
    %v50 = vld [vmem:[#allocation2 + $0x8] sm:$0xff]
    %v51 = vld [vmem:[#allocation5] sm:$0xff]
    %v52 = vld [vmem:[#allocation5 + $0x8] sm:$0xff]
    %v53 = vld [vmem:[#allocation5 + $0x10] sm:$0xff]
    %v54 = vld [vmem:[#allocation5 + $0x18] sm:$0xff]
    %v55 = vld [vmem:[#allocation5 + $0x20] sm:$0xff]
    %v56 = vld [vmem:[#allocation5 + $0x28] sm:$0xff]
    %v57 = vld [vmem:[#allocation5 + $0x30] sm:$0xff]
    %v58 = vld [vmem:[#allocation5 + $0x38] sm:$0xff]
    %v59 = vld [vmem:[#allocation5 + $0x40] sm:$0xff]
    %v60 = vld [vmem:[#allocation5 + $0x48] sm:$0xff]
    %v61 = vld [vmem:[#allocation5 + $0x50] sm:$0xff]
    %v62 = vld [vmem:[#allocation5 + $0x58] sm:$0xff]
    %v63 = vld [vmem:[#allocation5 + $0x60] sm:$0xff]
    %v64 = vld [vmem:[#allocation5 + $0x68] sm:$0xff]
    %v65 = vld [vmem:[#allocation5 + $0x70] sm:$0xff]
    %v66 = vld [vmem:[#allocation5 + $0x78] sm:$0xff]
    %v67 = vld [vmem:[#allocation5 + $0x80] sm:$0xff]
    %v68 = vld [vmem:[#allocation5 + $0x88] sm:$0xff]
    %v69 = vld [vmem:[#allocation5 + $0x90] sm:$0xff]
    %v70 = vld [vmem:[#allocation5 + $0x98] sm:$0xff]
    %v71 = vld [vmem:[#allocation5 + $0xa0] sm:$0xff]
    %v72 = vld [vmem:[#allocation5 + $0xa8] sm:$0xff]
    %v73 = vld [vmem:[#allocation5 + $0xb0] sm:$0xff]
    %v74 = vld [vmem:[#allocation5 + $0xb8] sm:$0xff]
    %v75 = vld [vmem:[#allocation5 + $0xc0] sm:$0xff]
    %v76 = vld [vmem:[#allocation5 + $0xc8] sm:$0xff]
    %v77 = vld [vmem:[#allocation5 + $0xd0] sm:$0xff]
    %v78 = vld [vmem:[#allocation5 + $0xd8] sm:$0xff]
    %v79 = vld [vmem:[#allocation5 + $0xe0] sm:$0xff]
    %v80 = vld [vmem:[#allocation5 + $0xe8] sm:$0xff]
    %v81 = vld [vmem:[#allocation5 + $0xf0] sm:$0xff]
    %v82 = vld [vmem:[#allocation5 + $0xf8] sm:$0xff]
    %v83 = vld [vmem:[#allocation5 + $0x100] sm:$0xff]
    %v84 = vld [vmem:[#allocation5 + $0x108] sm:$0xff]
    %v85 = vld [vmem:[#allocation5 + $0x110] sm:$0xff]
    %v86 = vld [vmem:[#allocation5 + $0x118] sm:$0xff]
    %v87 = vld [vmem:[#allocation5 + $0x120] sm:$0xff]
    %v88 = vld [vmem:[#allocation5 + $0x128] sm:$0xff]
    %v89 = vld [vmem:[#allocation5 + $0x130] sm:$0xff]
    %v90 = vld [vmem:[#allocation5 + $0x138] sm:$0xff]
    %v91 = vld [vmem:[#allocation5 + $0x140] sm:$0xff]
    %v92 = vld [vmem:[#allocation5 + $0x148] sm:$0xff]
    %v93 = vld [vmem:[#allocation5 + $0x150] sm:$0xff]
    %v94 = vld [vmem:[#allocation5 + $0x158] sm:$0xff]
    %v95 = vld [vmem:[#allocation5 + $0x160] sm:$0xff]
    %v96 = vld [vmem:[#allocation5 + $0x168] sm:$0xff]
    %v97 = vld [vmem:[#allocation5 + $0x170] sm:$0xff]
    %v98 = vld [vmem:[#allocation5 + $0x178] sm:$0xff]
    %v99 = vld [vmem:[%s3] sm:$0xff]
    %v100 = vld [vmem:[%s3 + $0x8] sm:$0x3]
    %v101 = vpack.c.bf16 %v48, %v47
    %v134 = vunpack.c.l.b16 %v51
    %v135 = vunpack.c.h.b16 %v51
    %v136 = vunpack.c.l.b16 %v52
    %v137 = vunpack.c.l.b16 %v54
    %v138 = vunpack.c.h.b16 %v54
    %v139 = vunpack.c.l.b16 %v55
    %v140 = vunpack.c.l.b16 %v57
    %v141 = vunpack.c.h.b16 %v57
    %v142 = vunpack.c.l.b16 %v58
    %v143 = vunpack.c.l.b16 %v60
    %v144 = vunpack.c.h.b16 %v60
    %v145 = vunpack.c.l.b16 %v61
    %v146 = vunpack.c.l.b16 %v63
    %v147 = vunpack.c.h.b16 %v63
    %v148 = vunpack.c.l.b16 %v64
    %v149 = vunpack.c.l.b16 %v66
    %v150 = vunpack.c.h.b16 %v66
    %v151 = vunpack.c.l.b16 %v67
    %v152 = vunpack.c.l.b16 %v69
    %v153 = vunpack.c.h.b16 %v69
    %v154 = vunpack.c.l.b16 %v70
    %v155 = vunpack.c.l.b16 %v72
    %v156 = vunpack.c.h.b16 %v72
    %v157 = vunpack.c.l.b16 %v73
    %v158 = vunpack.c.l.b16 %v75
    %v159 = vunpack.c.h.b16 %v75
    %v160 = vunpack.c.l.b16 %v76
    %v161 = vunpack.c.l.b16 %v78
    %v162 = vunpack.c.h.b16 %v78
    %v163 = vunpack.c.l.b16 %v79
    %v164 = vunpack.c.l.b16 %v81
    %v165 = vunpack.c.h.b16 %v81
    %v166 = vunpack.c.l.b16 %v82
    %v167 = vunpack.c.l.b16 %v84
    %v168 = vunpack.c.h.b16 %v84
    %v169 = vunpack.c.l.b16 %v85
    %v170 = vunpack.c.l.b16 %v87
    %v171 = vunpack.c.h.b16 %v87
    %v172 = vunpack.c.l.b16 %v88
    %v173 = vunpack.c.l.b16 %v90
    %v174 = vunpack.c.h.b16 %v90
    %v175 = vunpack.c.l.b16 %v91
    %v176 = vunpack.c.l.b16 %v93
    %v177 = vunpack.c.h.b16 %v93
    %v178 = vunpack.c.l.b16 %v94
    %v179 = vunpack.c.l.b16 %v96
    %v180 = vunpack.c.h.b16 %v96
    %v181 = vunpack.c.l.b16 %v97
    %v182 = vpack.c.b16 %v137, %v134
    %v183 = vpack.c.b16 %v138, %v135
    %v184 = vpack.c.b16 %v139, %v136
    %v185 = vpack.c.b16 %v143, %v140
    %v186 = vpack.c.b16 %v144, %v141
    %v187 = vpack.c.b16 %v145, %v142
    %v188 = vpack.c.b16 %v149, %v146
    %v189 = vpack.c.b16 %v150, %v147
    %v190 = vpack.c.b16 %v151, %v148
    %v191 = vpack.c.b16 %v155, %v152
    %v192 = vpack.c.b16 %v156, %v153
    %v193 = vpack.c.b16 %v157, %v154
    %v194 = vpack.c.b16 %v161, %v158
    %v195 = vpack.c.b16 %v162, %v159
    %v196 = vpack.c.b16 %v163, %v160
    %v197 = vpack.c.b16 %v167, %v164
    %v198 = vpack.c.b16 %v168, %v165
    %v199 = vpack.c.b16 %v169, %v166
    %v200 = vpack.c.b16 %v173, %v170
    %v201 = vpack.c.b16 %v174, %v171
    %v202 = vpack.c.b16 %v175, %v172
    %v203 = vpack.c.b16 %v179, %v176
    %v204 = vpack.c.b16 %v180, %v177
    %v205 = vpack.c.b16 %v181, %v178
    %230 = vmatprep.subr.bf16.mxu0 %v183
    %231 = vmatpush1.bf16.msra.mxu0 %v182
    %232 = vmatprep.subr.bf16.mxu0 %v186
    %233 = vmatpush1.bf16.msra.mxu0 %v185
    %234 = vmatprep.subr.bf16.mxu0 %v189
    %235 = vmatpush1.bf16.msra.mxu0 %v188
    %236 = vmatprep.subr.bf16.mxu0 %v192
    %237 = vmatpush1.bf16.msra.mxu0 %v191
    %238 = vmatprep.subr.bf16.mxu0 %v195
    %239 = vmatpush1.bf16.msra.mxu0 %v194
    %240 = vmatprep.subr.bf16.mxu0 %v198
    %241 = vmatpush1.bf16.msra.mxu0 %v197
    %242 = vmatprep.subr.bf16.mxu0 %v201
    %243 = vmatpush1.bf16.msra.mxu0 %v200
    %244 = vmatprep.subr.bf16.mxu0 %v204
    %245 = vmatpush1.bf16.msra.mxu0 %v203
    %246 = vmatprep.subr.bf16.mxu0 0
    %247 = vmatpush1.bf16.msra.mxu0 0
    %248 = vmatprep.subr.bf16.mxu0 0
    %249 = vmatpush1.bf16.msra.mxu0 0
    %250 = vmatprep.subr.bf16.mxu0 0
    %251 = vmatpush1.bf16.msra.mxu0 0
    %252 = vmatprep.subr.bf16.mxu0 0
    %253 = vmatpush1.bf16.msra.mxu0 0
    %254 = vmatprep.subr.bf16.mxu0 0
    %255 = vmatpush1.bf16.msra.mxu0 0
    %256 = vmatprep.subr.bf16.mxu0 0
    %257 = vmatpush1.bf16.msra.mxu0 0
    %258 = vmatprep.subr.bf16.mxu0 0
    %259 = vmatpush1.bf16.msra.mxu0 0
    %260 = vmatprep.subr.bf16.mxu0 0
    %261 = vmatpush1.bf16.msra.mxu0 0
    %262 = vmatprep.mubr.bf16.mxu0 0
    %263 = vmatmul.mubr.bf16.gmra.mrb[0].mxu0 %v101
    %v264 = vpop.f32.mrb[0].mxu0
    %v265 = vadd.f32 0.0, %v264
    %v266 = vpop.f32.mrb[0].mxu0
    %v267 = vadd.f32 0.0, %v266
    %v268 = vpop.f32.mrb[0].mxu0
    %v269 = vadd.f32 0.0, %v268
    %v270 = vpop.f32.mrb[0].mxu0
    %v271 = vadd.f32 0.0, %v270
    %272 = vdwg.mxu0
    %273 = vmatprep.subr.bf16.mxu0 0
    %274 = vmatpush1.bf16.msra.mxu0 %v184
    %275 = vmatprep.subr.bf16.mxu0 0
    %276 = vmatpush1.bf16.msra.mxu0 %v187
    %277 = vmatprep.subr.bf16.mxu0 0
    %278 = vmatpush1.bf16.msra.mxu0 %v190
    %279 = vmatprep.subr.bf16.mxu0 0
    %280 = vmatpush1.bf16.msra.mxu0 %v193
    %281 = vmatprep.subr.bf16.mxu0 0
    %282 = vmatpush1.bf16.msra.mxu0 %v196
    %283 = vmatprep.subr.bf16.mxu0 0
    %284 = vmatpush1.bf16.msra.mxu0 %v199
    %285 = vmatprep.subr.bf16.mxu0 0
    %286 = vmatpush1.bf16.msra.mxu0 %v202
    %287 = vmatprep.subr.bf16.mxu0 0
    %288 = vmatpush1.bf16.msra.mxu0 %v205
    %289 = vmatprep.subr.bf16.mxu0 0
    %290 = vmatpush1.bf16.msra.mxu0 0
    %291 = vmatprep.subr.bf16.mxu0 0
    %292 = vmatpush1.bf16.msra.mxu0 0
    %293 = vmatprep.subr.bf16.mxu0 0
    %294 = vmatpush1.bf16.msra.mxu0 0
    %295 = vmatprep.subr.bf16.mxu0 0
    %296 = vmatpush1.bf16.msra.mxu0 0
    %297 = vmatprep.subr.bf16.mxu0 0
    %298 = vmatpush1.bf16.msra.mxu0 0
    %299 = vmatprep.subr.bf16.mxu0 0
    %300 = vmatpush1.bf16.msra.mxu0 0
    %301 = vmatprep.subr.bf16.mxu0 0
    %302 = vmatpush1.bf16.msra.mxu0 0
    %303 = vmatprep.subr.bf16.mxu0 0
    %304 = vmatpush1.bf16.msra.mxu0 0
    %305 = vmatprep.mubr.bf16.mxu0 0
    %306 = vmatmul.mubr.bf16.gmra.mrb[0].mxu0 %v101
    %v307 = vpop.f32.mrb[0].mxu0
    %v308 = vadd.f32 0.0, %v307
    %v309 = vpop.f32.mrb[0].mxu0
    %v310 = vpop.f32.mrb[0].mxu0
    %v311 = vadd.f32 0.0, %v310
    %v312 = vpop.f32.mrb[0].mxu0
    %313 = vdwg.mxu0
    %v314 = vlaneseq
    %v315 = vshrl.u32 %v314, 7
    %v316 = vsub.s32 0, %v315
    %v317 = vrot.slane %v99, %v316
    %v318 = vadd.f32 %v265, %v317
    %v319 = vadd.f32 %v269, %v317
    %v320 = vpack.c.bf16 %v319, %v318
    %v321 = vlaneseq
    %v322 = vshrl.u32 %v321, 7
    %v323 = vsub.s32 1, %v322
    %v324 = vrot.slane %v99, %v323
    %v325 = vadd.f32 %v267, %v324
    %v326 = vadd.f32 %v271, %v324
    %v327 = vpack.c.bf16 %v326, %v325
    %v328 = vlaneseq
    %v329 = vshrl.u32 %v328, 7
    %v330 = vsub.s32 2, %v329
    %v331 = vrot.slane %v99, %v330
    %v332 = vadd.f32 %v308, %v331
    %v333 = vadd.f32 %v311, %v331
    %v334 = vpack.c.bf16 %v333, %v332
    %vm335 = vcmask 261120
    %v337 = vsel %vm335, %v320, 0
    %v340 = vsel %vm335, %v327, 0
    %342 = vmatprep.subr.bf16.mxu0 0
    %343 = vmatpush1.bf16.xpose.msra.mxu0 %v340
    %344 = vmatprep.subr.bf16.mxu0 0
    %345 = vmatpush1.bf16.xpose.msra.mxu0 0
    %346 = vmatprep.subr.bf16.mxu0 0
    %347 = vmatpush1.bf16.xpose.msra.mxu0 0
    %348 = vmatprep.subr.bf16.mxu0 0
    %349 = vmatpush1.bf16.xpose.msra.mxu0 0
    %350 = vmatprep.subr.bf16.mxu0 0
    %351 = vmatpush1.bf16.xpose.msra.mxu0 0
    %352 = vmatprep.subr.bf16.mxu0 0
    %353 = vmatpush1.bf16.xpose.msra.mxu0 0
    %354 = vmatprep.subr.bf16.mxu0 0
    %355 = vmatpush1.bf16.xpose.msra.mxu0 0
    %356 = vmatprep.subr.bf16.mxu0 0
    %357 = vmatpush1.bf16.xpose.msra.mxu0 0
    %358 = vmatprep.subr.bf16.mxu0 0
    %359 = vmatpush1.bf16.xpose.msra.mxu0 0
    %360 = vmatprep.subr.bf16.mxu0 0
    %361 = vmatpush1.bf16.xpose.msra.mxu0 0
    %362 = vmatprep.subr.bf16.mxu0 0
    %363 = vmatpush1.bf16.xpose.msra.mxu0 0
    %364 = vmatprep.subr.bf16.mxu0 0
    %365 = vmatpush1.bf16.xpose.msra.mxu0 0
    %366 = vmatprep.subr.bf16.mxu0 0
    %367 = vmatpush1.bf16.xpose.msra.mxu0 0
    %368 = vmatprep.subr.bf16.mxu0 0
    %369 = vmatpush1.bf16.xpose.msra.mxu0 0
    %370 = vmatprep.subr.bf16.mxu0 0
    %371 = vmatpush1.bf16.xpose.msra.mxu0 0
    %372 = vmatprep.subr.bf16.mxu0 0
    %373 = vmatpush1.bf16.xpose.msra.mxu0 0
    %374 = vmatprep.mubr.bf16.mxu0 0
    %375 = vmatmul.mubr.bf16.gmra.mrb[0].mxu0 %v337
    %v376 = vpop.f32.mrb[0].mxu0
    %v377 = vadd.f32 0.0, %v376
    %v378 = vpop.f32.mrb[0].mxu0
    %v379 = vpop.f32.mrb[0].mxu0
    %v380 = vadd.f32 0.0, %v379
    %v381 = vpop.f32.mrb[0].mxu0
    %382 = vdwg.mxu0
    %v383 = vmul.f32 %v377, 0.17677669
    %v384 = vmul.f32 %v380, 0.17677669
    %v385 = vadd.f32 %v383, %v49
    %v386 = vadd.f32 %v384, %v50
    %vm387 = vcmask 130048
    %v388 = vsel %vm387, %v385, -inf
    %389 = vmax.xlane.f32.xlu0 %v388
    %v390 = vpop.xlane.xlu0 %389
    %v391 = vsel %vm387, %v386, -inf
    %392 = vmax.xlane.f32.xlu0 %v391
    %v393 = vpop.xlane.xlu0 %392
    %v394 = vsub.f32 %v385, %v390
    %v395 = vsub.f32 %v386, %v393
    %v396 = vmul.f32 %v394, 1.442695
    %v397 = vpow.pop %v396
    %v398 = vmul.f32 %v395, 1.442695
    %v399 = vpow.pop %v398
    %v400 = vsel %vm387, %v397, 0.0
    %401 = vadd.xlane.f32.xlu0 %v400
    %v402 = vpop.xlane.xlu0 %401
    %v403 = vsel %vm387, %v399, 0.0
    %404 = vadd.xlane.f32.xlu0 %v403
    %v405 = vpop.xlane.xlu0 %404
    %v406 = vrcp.pop %v402
    %v407 = vrcp.pop %v405
    %v408 = vmul.f32 %v397, %v406
    %v409 = vmul.f32 %v399, %v407
    %v410 = vpack.c.bf16 %v409, %v408
    %v412 = vsel %vm387, %v410, 0
    %414 = vmatprep.subr.bf16.mxu0 0
    %415 = vmatpush1.bf16.msra.mxu0 %v334
    %416 = vmatprep.subr.bf16.mxu0 0
    %417 = vmatpush1.bf16.msra.mxu0 0
    %418 = vmatprep.subr.bf16.mxu0 0
    %419 = vmatpush1.bf16.msra.mxu0 0
    %420 = vmatprep.subr.bf16.mxu0 0
    %421 = vmatpush1.bf16.msra.mxu0 0
    %422 = vmatprep.subr.bf16.mxu0 0
    %423 = vmatpush1.bf16.msra.mxu0 0
    %424 = vmatprep.subr.bf16.mxu0 0
    %425 = vmatpush1.bf16.msra.mxu0 0
    %426 = vmatprep.subr.bf16.mxu0 0
    %427 = vmatpush1.bf16.msra.mxu0 0
    %428 = vmatprep.subr.bf16.mxu0 0
    %429 = vmatpush1.bf16.msra.mxu0 0
    %430 = vmatprep.subr.bf16.mxu0 0
    %431 = vmatpush1.bf16.msra.mxu0 0
    %432 = vmatprep.subr.bf16.mxu0 0
    %433 = vmatpush1.bf16.msra.mxu0 0
    %434 = vmatprep.subr.bf16.mxu0 0
    %435 = vmatpush1.bf16.msra.mxu0 0
    %436 = vmatprep.subr.bf16.mxu0 0
    %437 = vmatpush1.bf16.msra.mxu0 0
    %438 = vmatprep.subr.bf16.mxu0 0
    %439 = vmatpush1.bf16.msra.mxu0 0
    %440 = vmatprep.subr.bf16.mxu0 0
    %441 = vmatpush1.bf16.msra.mxu0 0
    %442 = vmatprep.subr.bf16.mxu0 0
    %443 = vmatpush1.bf16.msra.mxu0 0
    %444 = vmatprep.subr.bf16.mxu0 0
    %445 = vmatpush1.bf16.msra.mxu0 0
    %446 = vmatprep.mubr.bf16.mxu0 0
    %447 = vmatmul.mubr.bf16.gmra.mrb[0].mxu0 %v412
    %v448 = vpop.f32.mrb[0].mxu0
    %v449 = vadd.f32 0.0, %v448
    %v450 = vpop.f32.mrb[0].mxu0
    %v451 = vpop.f32.mrb[0].mxu0
    %v452 = vadd.f32 0.0, %v451
    %v453 = vpop.f32.mrb[0].mxu0
    %454 = vdwg.mxu0
    %v455 = vpack.c.bf16 %v452, %v449
    %457 = vrot.lane.b32.xlu0 %v320, 96
    %v458 = vpop.permute.xlu0 %457
    %460 = vrot.lane.b32.xlu0 %v327, 96
    %v461 = vpop.permute.xlu0 %460
    %v463 = vsel %vm335, %v458, 0
    %v466 = vsel %vm335, %v461, 0
    %468 = vmatprep.subr.bf16.mxu0 0
    %469 = vmatpush1.bf16.xpose.msra.mxu0 %v466
    %470 = vmatprep.subr.bf16.mxu0 0
    %471 = vmatpush1.bf16.xpose.msra.mxu0 0
    %472 = vmatprep.subr.bf16.mxu0 0
    %473 = vmatpush1.bf16.xpose.msra.mxu0 0
    %474 = vmatprep.subr.bf16.mxu0 0
    %475 = vmatpush1.bf16.xpose.msra.mxu0 0
    %476 = vmatprep.subr.bf16.mxu0 0
    %477 = vmatpush1.bf16.xpose.msra.mxu0 0
    %478 = vmatprep.subr.bf16.mxu0 0
    %479 = vmatpush1.bf16.xpose.msra.mxu0 0
    %480 = vmatprep.subr.bf16.mxu0 0
    %481 = vmatpush1.bf16.xpose.msra.mxu0 0
    %482 = vmatprep.subr.bf16.mxu0 0
    %483 = vmatpush1.bf16.xpose.msra.mxu0 0
    %484 = vmatprep.subr.bf16.mxu0 0
    %485 = vmatpush1.bf16.xpose.msra.mxu0 0
    %486 = vmatprep.subr.bf16.mxu0 0
    %487 = vmatpush1.bf16.xpose.msra.mxu0 0
    %488 = vmatprep.subr.bf16.mxu0 0
    %489 = vmatpush1.bf16.xpose.msra.mxu0 0
    %490 = vmatprep.subr.bf16.mxu0 0
    %491 = vmatpush1.bf16.xpose.msra.mxu0 0
    %492 = vmatprep.subr.bf16.mxu0 0
    %493 = vmatpush1.bf16.xpose.msra.mxu0 0
    %494 = vmatprep.subr.bf16.mxu0 0
    %495 = vmatpush1.bf16.xpose.msra.mxu0 0
    %496 = vmatprep.subr.bf16.mxu0 0
    %497 = vmatpush1.bf16.xpose.msra.mxu0 0
    %498 = vmatprep.subr.bf16.mxu0 0
    %499 = vmatpush1.bf16.xpose.msra.mxu0 0
    %500 = vmatprep.mubr.bf16.mxu0 0
    %501 = vmatmul.mubr.bf16.gmra.mrb[0].mxu0 %v463
    %v502 = vpop.f32.mrb[0].mxu0
    %v503 = vadd.f32 0.0, %v502
    %v504 = vpop.f32.mrb[0].mxu0
    %v505 = vpop.f32.mrb[0].mxu0
    %v506 = vadd.f32 0.0, %v505
    %v507 = vpop.f32.mrb[0].mxu0
    %508 = vdwg.mxu0
    %v509 = vmul.f32 %v503, 0.17677669
    %v510 = vmul.f32 %v506, 0.17677669
    %v511 = vadd.f32 %v509, %v49
    %v512 = vadd.f32 %v510, %v50
    %v513 = vsel %vm387, %v511, -inf
    %514 = vmax.xlane.f32.xlu0 %v513
    %v515 = vpop.xlane.xlu0 %514
    %v516 = vsel %vm387, %v512, -inf
    %517 = vmax.xlane.f32.xlu0 %v516
    %v518 = vpop.xlane.xlu0 %517
    %v519 = vsub.f32 %v511, %v515
    %v520 = vsub.f32 %v512, %v518
    %v521 = vmul.f32 %v519, 1.442695
    %v522 = vpow.pop %v521
    %v523 = vmul.f32 %v520, 1.442695
    %v524 = vpow.pop %v523
    %v525 = vsel %vm387, %v522, 0.0
    %526 = vadd.xlane.f32.xlu0 %v525
    %v527 = vpop.xlane.xlu0 %526
    %v528 = vsel %vm387, %v524, 0.0
    %529 = vadd.xlane.f32.xlu0 %v528
    %v530 = vpop.xlane.xlu0 %529
    %v531 = vrcp.pop %v527
    %v532 = vrcp.pop %v530
    %v533 = vmul.f32 %v522, %v531
    %v534 = vmul.f32 %v524, %v532
    %v535 = vpack.c.bf16 %v534, %v533
    %537 = vrot.lane.b32.xlu0 %v334, 96
    %v538 = vpop.permute.xlu0 %537
    %v541 = vsel %vm387, %v535, 0
    %543 = vmatprep.subr.bf16.mxu0 0
    %544 = vmatpush1.bf16.msra.mxu0 %v538
    %545 = vmatprep.subr.bf16.mxu0 0
    %546 = vmatpush1.bf16.msra.mxu0 0
    %547 = vmatprep.subr.bf16.mxu0 0
    %548 = vmatpush1.bf16.msra.mxu0 0
    %549 = vmatprep.subr.bf16.mxu0 0
    %550 = vmatpush1.bf16.msra.mxu0 0
    %551 = vmatprep.subr.bf16.mxu0 0
    %552 = vmatpush1.bf16.msra.mxu0 0
    %553 = vmatprep.subr.bf16.mxu0 0
    %554 = vmatpush1.bf16.msra.mxu0 0
    %555 = vmatprep.subr.bf16.mxu0 0
    %556 = vmatpush1.bf16.msra.mxu0 0
    %557 = vmatprep.subr.bf16.mxu0 0
    %558 = vmatpush1.bf16.msra.mxu0 0
    %559 = vmatprep.subr.bf16.mxu0 0
    %560 = vmatpush1.bf16.msra.mxu0 0
    %561 = vmatprep.subr.bf16.mxu0 0
    %562 = vmatpush1.bf16.msra.mxu0 0
    %563 = vmatprep.subr.bf16.mxu0 0
    %564 = vmatpush1.bf16.msra.mxu0 0
    %565 = vmatprep.subr.bf16.mxu0 0
    %566 = vmatpush1.bf16.msra.mxu0 0
    %567 = vmatprep.subr.bf16.mxu0 0
    %568 = vmatpush1.bf16.msra.mxu0 0
    %569 = vmatprep.subr.bf16.mxu0 0
    %570 = vmatpush1.bf16.msra.mxu0 0
    %571 = vmatprep.subr.bf16.mxu0 0
    %572 = vmatpush1.bf16.msra.mxu0 0
    %573 = vmatprep.subr.bf16.mxu0 0
    %574 = vmatpush1.bf16.msra.mxu0 0
    %575 = vmatprep.mubr.bf16.mxu0 0
    %576 = vmatmul.mubr.bf16.gmra.mrb[0].mxu0 %v541
    %v577 = vpop.f32.mrb[0].mxu0
    %v578 = vadd.f32 0.0, %v577
    %v579 = vpop.f32.mrb[0].mxu0
    %v580 = vpop.f32.mrb[0].mxu0
    %v581 = vadd.f32 0.0, %v580
    %v582 = vpop.f32.mrb[0].mxu0
    %583 = vdwg.mxu0
    %v584 = vpack.c.bf16 %v581, %v578
    %v585 = vunpack.c.h.b16 %v64
    %v586 = vunpack.c.h.b16 %v67
    %v587 = vunpack.c.h.b16 %v70
    %v588 = vunpack.c.h.b16 %v73
    %v589 = vpack.c.b16 %v586, %v585
    %v590 = vpack.c.b16 %v588, %v587
    %v594 = vsel %vm335, %v584, 0
    %596 = vmatprep.subr.bf16.mxu0 0
    %597 = vmatpush1.bf16.msra.mxu0 %v589
    %598 = vmatprep.subr.bf16.mxu0 0
    %599 = vmatpush1.bf16.msra.mxu0 %v590
    %600 = vmatprep.subr.bf16.mxu0 0
    %601 = vmatpush1.bf16.msra.mxu0 0
    %602 = vmatprep.subr.bf16.mxu0 0
    %603 = vmatpush1.bf16.msra.mxu0 0
    %604 = vmatprep.subr.bf16.mxu0 0
    %605 = vmatpush1.bf16.msra.mxu0 0
    %606 = vmatprep.subr.bf16.mxu0 0
    %607 = vmatpush1.bf16.msra.mxu0 0
    %608 = vmatprep.subr.bf16.mxu0 0
    %609 = vmatpush1.bf16.msra.mxu0 0
    %610 = vmatprep.subr.bf16.mxu0 0
    %611 = vmatpush1.bf16.msra.mxu0 0
    %612 = vmatprep.subr.bf16.mxu0 0
    %613 = vmatpush1.bf16.msra.mxu0 0
    %614 = vmatprep.subr.bf16.mxu0 0
    %615 = vmatpush1.bf16.msra.mxu0 0
    %616 = vmatprep.subr.bf16.mxu0 0
    %617 = vmatpush1.bf16.msra.mxu0 0
    %618 = vmatprep.subr.bf16.mxu0 0
    %619 = vmatpush1.bf16.msra.mxu0 0
    %620 = vmatprep.subr.bf16.mxu0 0
    %621 = vmatpush1.bf16.msra.mxu0 0
    %622 = vmatprep.subr.bf16.mxu0 0
    %623 = vmatpush1.bf16.msra.mxu0 0
    %624 = vmatprep.subr.bf16.mxu0 0
    %625 = vmatpush1.bf16.msra.mxu0 0
    %626 = vmatprep.subr.bf16.mxu0 0
    %627 = vmatpush1.bf16.msra.mxu0 0
    %628 = vmatprep.mubr.bf16.mxu0 0
    %629 = vmatmul.mubr.bf16.gmra.mrb[0].mxu0 %v594
    %v630 = vpop.f32.mrb[0].mxu0
    %v631 = vadd.f32 0.0, %v630
    %v632 = vpop.f32.mrb[0].mxu0
    %v633 = vpop.f32.mrb[0].mxu0
    %v634 = vadd.f32 0.0, %v633
    %v635 = vpop.f32.mrb[0].mxu0
    %636 = vdwg.mxu0
    %v637 = vunpack.c.h.b16 %v52
    %v638 = vunpack.c.h.b16 %v55
    %v639 = vunpack.c.h.b16 %v58
    %v640 = vunpack.c.h.b16 %v61
    %v641 = vpack.c.b16 %v638, %v637
    %v642 = vpack.c.b16 %v640, %v639
    %v646 = vsel %vm335, %v455, 0
    %648 = vmatprep.subr.bf16.mxu0 0
    %649 = vmatpush1.bf16.msra.mxu0 %v641
    %650 = vmatprep.subr.bf16.mxu0 0
    %651 = vmatpush1.bf16.msra.mxu0 %v642
    %652 = vmatprep.subr.bf16.mxu0 0
    %653 = vmatpush1.bf16.msra.mxu0 0
    %654 = vmatprep.subr.bf16.mxu0 0
    %655 = vmatpush1.bf16.msra.mxu0 0
    %656 = vmatprep.subr.bf16.mxu0 0
    %657 = vmatpush1.bf16.msra.mxu0 0
    %658 = vmatprep.subr.bf16.mxu0 0
    %659 = vmatpush1.bf16.msra.mxu0 0
    %660 = vmatprep.subr.bf16.mxu0 0
    %661 = vmatpush1.bf16.msra.mxu0 0
    %662 = vmatprep.subr.bf16.mxu0 0
    %663 = vmatpush1.bf16.msra.mxu0 0
    %664 = vmatprep.subr.bf16.mxu0 0
    %665 = vmatpush1.bf16.msra.mxu0 0
    %666 = vmatprep.subr.bf16.mxu0 0
    %667 = vmatpush1.bf16.msra.mxu0 0
    %668 = vmatprep.subr.bf16.mxu0 0
    %669 = vmatpush1.bf16.msra.mxu0 0
    %670 = vmatprep.subr.bf16.mxu0 0
    %671 = vmatpush1.bf16.msra.mxu0 0
    %672 = vmatprep.subr.bf16.mxu0 0
    %673 = vmatpush1.bf16.msra.mxu0 0
    %674 = vmatprep.subr.bf16.mxu0 0
    %675 = vmatpush1.bf16.msra.mxu0 0
    %676 = vmatprep.subr.bf16.mxu0 0
    %677 = vmatpush1.bf16.msra.mxu0 0
    %678 = vmatprep.subr.bf16.mxu0 0
    %679 = vmatpush1.bf16.msra.mxu0 0
    %680 = vmatprep.mubr.bf16.mxu0 0
    %681 = vmatmul.mubr.bf16.gmra.mrb[0].mxu0 %v646
    %v682 = vpop.f32.mrb[0].mxu0
    %v683 = vadd.f32 %v631, %v682
    %v684 = vpop.f32.mrb[0].mxu0
    %v685 = vpop.f32.mrb[0].mxu0
    %v686 = vadd.f32 %v634, %v685
    %v687 = vpop.f32.mrb[0].mxu0
    %688 = vdwg.mxu0
    %689 = vrot.lane.b32.xlu0 %v320, 64
    %v690 = vpop.permute.xlu0 %689
    %691 = vrot.lane.b32.xlu0 %v327, 64
    %v692 = vpop.permute.xlu0 %691
    %v694 = vsel %vm335, %v690, 0
    %v697 = vsel %vm335, %v692, 0
    %699 = vmatprep.subr.bf16.mxu0 0
    %700 = vmatpush1.bf16.xpose.msra.mxu0 %v697
    %701 = vmatprep.subr.bf16.mxu0 0
    %702 = vmatpush1.bf16.xpose.msra.mxu0 0
    %703 = vmatprep.subr.bf16.mxu0 0
    %704 = vmatpush1.bf16.xpose.msra.mxu0 0
    %705 = vmatprep.subr.bf16.mxu0 0
    %706 = vmatpush1.bf16.xpose.msra.mxu0 0
    %707 = vmatprep.subr.bf16.mxu0 0
    %708 = vmatpush1.bf16.xpose.msra.mxu0 0
    %709 = vmatprep.subr.bf16.mxu0 0
    %710 = vmatpush1.bf16.xpose.msra.mxu0 0
    %711 = vmatprep.subr.bf16.mxu0 0
    %712 = vmatpush1.bf16.xpose.msra.mxu0 0
    %713 = vmatprep.subr.bf16.mxu0 0
    %714 = vmatpush1.bf16.xpose.msra.mxu0 0
    %715 = vmatprep.subr.bf16.mxu0 0
    %716 = vmatpush1.bf16.xpose.msra.mxu0 0
    %717 = vmatprep.subr.bf16.mxu0 0
    %718 = vmatpush1.bf16.xpose.msra.mxu0 0
    %719 = vmatprep.subr.bf16.mxu0 0
    %720 = vmatpush1.bf16.xpose.msra.mxu0 0
    %721 = vmatprep.subr.bf16.mxu0 0
    %722 = vmatpush1.bf16.xpose.msra.mxu0 0
    %723 = vmatprep.subr.bf16.mxu0 0
    %724 = vmatpush1.bf16.xpose.msra.mxu0 0
    %725 = vmatprep.subr.bf16.mxu0 0
    %726 = vmatpush1.bf16.xpose.msra.mxu0 0
    %727 = vmatprep.subr.bf16.mxu0 0
    %728 = vmatpush1.bf16.xpose.msra.mxu0 0
    %729 = vmatprep.subr.bf16.mxu0 0
    %730 = vmatpush1.bf16.xpose.msra.mxu0 0
    %731 = vmatprep.mubr.bf16.mxu0 0
    %732 = vmatmul.mubr.bf16.gmra.mrb[0].mxu0 %v694
    %v733 = vpop.f32.mrb[0].mxu0
    %v734 = vadd.f32 0.0, %v733
    %v735 = vpop.f32.mrb[0].mxu0
    %v736 = vpop.f32.mrb[0].mxu0
    %v737 = vadd.f32 0.0, %v736
    %v738 = vpop.f32.mrb[0].mxu0
    %739 = vdwg.mxu0
    %v740 = vmul.f32 %v734, 0.17677669
    %v741 = vmul.f32 %v737, 0.17677669
    %v742 = vadd.f32 %v740, %v49
    %v743 = vadd.f32 %v741, %v50
    %v744 = vsel %vm387, %v742, -inf
    %745 = vmax.xlane.f32.xlu0 %v744
    %v746 = vpop.xlane.xlu0 %745
    %v747 = vsel %vm387, %v743, -inf
    %748 = vmax.xlane.f32.xlu0 %v747
    %v749 = vpop.xlane.xlu0 %748
    %v750 = vsub.f32 %v742, %v746
    %v751 = vsub.f32 %v743, %v749
    %v752 = vmul.f32 %v750, 1.442695
    %v753 = vpow.pop %v752
    %v754 = vmul.f32 %v751, 1.442695
    %v755 = vpow.pop %v754
    %v756 = vsel %vm387, %v753, 0.0
    %757 = vadd.xlane.f32.xlu0 %v756
    %v758 = vpop.xlane.xlu0 %757
    %v759 = vsel %vm387, %v755, 0.0
    %760 = vadd.xlane.f32.xlu0 %v759
    %v761 = vpop.xlane.xlu0 %760
    %v762 = vrcp.pop %v758
    %v763 = vrcp.pop %v761
    %v764 = vmul.f32 %v753, %v762
    %v765 = vmul.f32 %v755, %v763
    %v766 = vpack.c.bf16 %v765, %v764
    %767 = vrot.lane.b32.xlu0 %v334, 64
    %v768 = vpop.permute.xlu0 %767
    %v771 = vsel %vm387, %v766, 0
    %773 = vmatprep.subr.bf16.mxu0 0
    %774 = vmatpush1.bf16.msra.mxu0 %v768
    %775 = vmatprep.subr.bf16.mxu0 0
    %776 = vmatpush1.bf16.msra.mxu0 0
    %777 = vmatprep.subr.bf16.mxu0 0
    %778 = vmatpush1.bf16.msra.mxu0 0
    %779 = vmatprep.subr.bf16.mxu0 0
    %780 = vmatpush1.bf16.msra.mxu0 0
    %781 = vmatprep.subr.bf16.mxu0 0
    %782 = vmatpush1.bf16.msra.mxu0 0
    %783 = vmatprep.subr.bf16.mxu0 0
    %784 = vmatpush1.bf16.msra.mxu0 0
    %785 = vmatprep.subr.bf16.mxu0 0
    %786 = vmatpush1.bf16.msra.mxu0 0
    %787 = vmatprep.subr.bf16.mxu0 0
    %788 = vmatpush1.bf16.msra.mxu0 0
    %789 = vmatprep.subr.bf16.mxu0 0
    %790 = vmatpush1.bf16.msra.mxu0 0
    %791 = vmatprep.subr.bf16.mxu0 0
    %792 = vmatpush1.bf16.msra.mxu0 0
    %793 = vmatprep.subr.bf16.mxu0 0
    %794 = vmatpush1.bf16.msra.mxu0 0
    %795 = vmatprep.subr.bf16.mxu0 0
    %796 = vmatpush1.bf16.msra.mxu0 0
    %797 = vmatprep.subr.bf16.mxu0 0
    %798 = vmatpush1.bf16.msra.mxu0 0
    %799 = vmatprep.subr.bf16.mxu0 0
    %800 = vmatpush1.bf16.msra.mxu0 0
    %801 = vmatprep.subr.bf16.mxu0 0
    %802 = vmatpush1.bf16.msra.mxu0 0
    %803 = vmatprep.subr.bf16.mxu0 0
    %804 = vmatpush1.bf16.msra.mxu0 0
    %805 = vmatprep.mubr.bf16.mxu0 0
    %806 = vmatmul.mubr.bf16.gmra.mrb[0].mxu0 %v771
    %v807 = vpop.f32.mrb[0].mxu0
    %v808 = vadd.f32 0.0, %v807
    %v809 = vpop.f32.mrb[0].mxu0
    %v810 = vpop.f32.mrb[0].mxu0
    %v811 = vadd.f32 0.0, %v810
    %v812 = vpop.f32.mrb[0].mxu0
    %813 = vdwg.mxu0
    %v814 = vpack.c.bf16 %v811, %v808
    %v815 = vunpack.c.h.b16 %v76
    %v816 = vunpack.c.h.b16 %v79
    %v817 = vunpack.c.h.b16 %v82
    %v818 = vunpack.c.h.b16 %v85
    %v819 = vpack.c.b16 %v816, %v815
    %v820 = vpack.c.b16 %v818, %v817
    %v824 = vsel %vm335, %v814, 0
    %826 = vmatprep.subr.bf16.mxu0 0
    %827 = vmatpush1.bf16.msra.mxu0 %v819
    %828 = vmatprep.subr.bf16.mxu0 0
    %829 = vmatpush1.bf16.msra.mxu0 %v820
    %830 = vmatprep.subr.bf16.mxu0 0
    %831 = vmatpush1.bf16.msra.mxu0 0
    %832 = vmatprep.subr.bf16.mxu0 0
    %833 = vmatpush1.bf16.msra.mxu0 0
    %834 = vmatprep.subr.bf16.mxu0 0
    %835 = vmatpush1.bf16.msra.mxu0 0
    %836 = vmatprep.subr.bf16.mxu0 0
    %837 = vmatpush1.bf16.msra.mxu0 0
    %838 = vmatprep.subr.bf16.mxu0 0
    %839 = vmatpush1.bf16.msra.mxu0 0
    %840 = vmatprep.subr.bf16.mxu0 0
    %841 = vmatpush1.bf16.msra.mxu0 0
    %842 = vmatprep.subr.bf16.mxu0 0
    %843 = vmatpush1.bf16.msra.mxu0 0
    %844 = vmatprep.subr.bf16.mxu0 0
    %845 = vmatpush1.bf16.msra.mxu0 0
    %846 = vmatprep.subr.bf16.mxu0 0
    %847 = vmatpush1.bf16.msra.mxu0 0
    %848 = vmatprep.subr.bf16.mxu0 0
    %849 = vmatpush1.bf16.msra.mxu0 0
    %850 = vmatprep.subr.bf16.mxu0 0
    %851 = vmatpush1.bf16.msra.mxu0 0
    %852 = vmatprep.subr.bf16.mxu0 0
    %853 = vmatpush1.bf16.msra.mxu0 0
    %854 = vmatprep.subr.bf16.mxu0 0
    %855 = vmatpush1.bf16.msra.mxu0 0
    %856 = vmatprep.subr.bf16.mxu0 0
    %857 = vmatpush1.bf16.msra.mxu0 0
    %858 = vmatprep.mubr.bf16.mxu0 0
    %859 = vmatmul.mubr.bf16.gmra.mrb[0].mxu0 %v824
    %v860 = vpop.f32.mrb[0].mxu0
    %v861 = vadd.f32 0.0, %v860
    %v862 = vpop.f32.mrb[0].mxu0
    %v863 = vpop.f32.mrb[0].mxu0
    %v864 = vadd.f32 0.0, %v863
    %v865 = vpop.f32.mrb[0].mxu0
    %866 = vdwg.mxu0
    %v867 = vadd.f32 %v683, %v861
    %v868 = vadd.f32 %v686, %v864
    %869 = vrot.lane.b32.xlu0 %v320, 32
    %v870 = vpop.permute.xlu0 %869
    %871 = vrot.lane.b32.xlu0 %v327, 32
    %v872 = vpop.permute.xlu0 %871
    %v874 = vsel %vm335, %v870, 0
    %v877 = vsel %vm335, %v872, 0
    %879 = vmatprep.subr.bf16.mxu0 0
    %880 = vmatpush1.bf16.xpose.msra.mxu0 %v877
    %881 = vmatprep.subr.bf16.mxu0 0
    %882 = vmatpush1.bf16.xpose.msra.mxu0 0
    %883 = vmatprep.subr.bf16.mxu0 0
    %884 = vmatpush1.bf16.xpose.msra.mxu0 0
    %885 = vmatprep.subr.bf16.mxu0 0
    %886 = vmatpush1.bf16.xpose.msra.mxu0 0
    %887 = vmatprep.subr.bf16.mxu0 0
    %888 = vmatpush1.bf16.xpose.msra.mxu0 0
    %889 = vmatprep.subr.bf16.mxu0 0
    %890 = vmatpush1.bf16.xpose.msra.mxu0 0
    %891 = vmatprep.subr.bf16.mxu0 0
    %892 = vmatpush1.bf16.xpose.msra.mxu0 0
    %893 = vmatprep.subr.bf16.mxu0 0
    %894 = vmatpush1.bf16.xpose.msra.mxu0 0
    %895 = vmatprep.subr.bf16.mxu0 0
    %896 = vmatpush1.bf16.xpose.msra.mxu0 0
    %897 = vmatprep.subr.bf16.mxu0 0
    %898 = vmatpush1.bf16.xpose.msra.mxu0 0
    %899 = vmatprep.subr.bf16.mxu0 0
    %900 = vmatpush1.bf16.xpose.msra.mxu0 0
    %901 = vmatprep.subr.bf16.mxu0 0
    %902 = vmatpush1.bf16.xpose.msra.mxu0 0
    %903 = vmatprep.subr.bf16.mxu0 0
    %904 = vmatpush1.bf16.xpose.msra.mxu0 0
    %905 = vmatprep.subr.bf16.mxu0 0
    %906 = vmatpush1.bf16.xpose.msra.mxu0 0
    %907 = vmatprep.subr.bf16.mxu0 0
    %908 = vmatpush1.bf16.xpose.msra.mxu0 0
    %909 = vmatprep.subr.bf16.mxu0 0
    %910 = vmatpush1.bf16.xpose.msra.mxu0 0
    %911 = vmatprep.mubr.bf16.mxu0 0
    %912 = vmatmul.mubr.bf16.gmra.mrb[0].mxu0 %v874
    %v913 = vpop.f32.mrb[0].mxu0
    %v914 = vadd.f32 0.0, %v913
    %v915 = vpop.f32.mrb[0].mxu0
    %v916 = vpop.f32.mrb[0].mxu0
    %v917 = vadd.f32 0.0, %v916
    %v918 = vpop.f32.mrb[0].mxu0
    %919 = vdwg.mxu0
    %v920 = vmul.f32 %v914, 0.17677669
    %v921 = vmul.f32 %v917, 0.17677669
    %v922 = vadd.f32 %v920, %v49
    %v923 = vadd.f32 %v921, %v50
    %v924 = vsel %vm387, %v922, -inf
    %925 = vmax.xlane.f32.xlu0 %v924
    %v926 = vpop.xlane.xlu0 %925
    %v927 = vsel %vm387, %v923, -inf
    %928 = vmax.xlane.f32.xlu0 %v927
    %v929 = vpop.xlane.xlu0 %928
    %v930 = vsub.f32 %v922, %v926
    %v931 = vsub.f32 %v923, %v929
    %v932 = vmul.f32 %v930, 1.442695
    %v933 = vpow.pop %v932
    %v934 = vmul.f32 %v931, 1.442695
    %v935 = vpow.pop %v934
    %v936 = vsel %vm387, %v933, 0.0
    %937 = vadd.xlane.f32.xlu0 %v936
    %v938 = vpop.xlane.xlu0 %937
    %v939 = vsel %vm387, %v935, 0.0
    %940 = vadd.xlane.f32.xlu0 %v939
    %v941 = vpop.xlane.xlu0 %940
    %v942 = vrcp.pop %v938
    %v943 = vrcp.pop %v941
    %v944 = vmul.f32 %v933, %v942
    %v945 = vmul.f32 %v935, %v943
    %v946 = vpack.c.bf16 %v945, %v944
    %947 = vrot.lane.b32.xlu0 %v334, 32
    %v948 = vpop.permute.xlu0 %947
    %v951 = vsel %vm387, %v946, 0
    %953 = vmatprep.subr.bf16.mxu0 0
    %954 = vmatpush1.bf16.msra.mxu0 %v948
    %955 = vmatprep.subr.bf16.mxu0 0
    %956 = vmatpush1.bf16.msra.mxu0 0
    %957 = vmatprep.subr.bf16.mxu0 0
    %958 = vmatpush1.bf16.msra.mxu0 0
    %959 = vmatprep.subr.bf16.mxu0 0
    %960 = vmatpush1.bf16.msra.mxu0 0
    %961 = vmatprep.subr.bf16.mxu0 0
    %962 = vmatpush1.bf16.msra.mxu0 0
    %963 = vmatprep.subr.bf16.mxu0 0
    %964 = vmatpush1.bf16.msra.mxu0 0
    %965 = vmatprep.subr.bf16.mxu0 0
    %966 = vmatpush1.bf16.msra.mxu0 0
    %967 = vmatprep.subr.bf16.mxu0 0
    %968 = vmatpush1.bf16.msra.mxu0 0
    %969 = vmatprep.subr.bf16.mxu0 0
    %970 = vmatpush1.bf16.msra.mxu0 0
    %971 = vmatprep.subr.bf16.mxu0 0
    %972 = vmatpush1.bf16.msra.mxu0 0
    %973 = vmatprep.subr.bf16.mxu0 0
    %974 = vmatpush1.bf16.msra.mxu0 0
    %975 = vmatprep.subr.bf16.mxu0 0
    %976 = vmatpush1.bf16.msra.mxu0 0
    %977 = vmatprep.subr.bf16.mxu0 0
    %978 = vmatpush1.bf16.msra.mxu0 0
    %979 = vmatprep.subr.bf16.mxu0 0
    %980 = vmatpush1.bf16.msra.mxu0 0
    %981 = vmatprep.subr.bf16.mxu0 0
    %982 = vmatpush1.bf16.msra.mxu0 0
    %983 = vmatprep.subr.bf16.mxu0 0
    %984 = vmatpush1.bf16.msra.mxu0 0
    %985 = vmatprep.mubr.bf16.mxu0 0
    %986 = vmatmul.mubr.bf16.gmra.mrb[0].mxu0 %v951
    %v987 = vpop.f32.mrb[0].mxu0
    %v988 = vadd.f32 0.0, %v987
    %v989 = vpop.f32.mrb[0].mxu0
    %v990 = vpop.f32.mrb[0].mxu0
    %v991 = vadd.f32 0.0, %v990
    %v992 = vpop.f32.mrb[0].mxu0
    %993 = vdwg.mxu0
    %v994 = vpack.c.bf16 %v991, %v988
    %v995 = vunpack.c.h.b16 %v88
    %v996 = vunpack.c.h.b16 %v91
    %v997 = vunpack.c.h.b16 %v94
    %v998 = vunpack.c.h.b16 %v97
    %v999 = vpack.c.b16 %v996, %v995
    %v1000 = vpack.c.b16 %v998, %v997
    %v1004 = vsel %vm335, %v994, 0
    %1006 = vmatprep.subr.bf16.mxu0 0
    %1007 = vmatpush1.bf16.msra.mxu0 %v999
    %1008 = vmatprep.subr.bf16.mxu0 0
    %1009 = vmatpush1.bf16.msra.mxu0 %v1000
    %1010 = vmatprep.subr.bf16.mxu0 0
    %1011 = vmatpush1.bf16.msra.mxu0 0
    %1012 = vmatprep.subr.bf16.mxu0 0
    %1013 = vmatpush1.bf16.msra.mxu0 0
    %1014 = vmatprep.subr.bf16.mxu0 0
    %1015 = vmatpush1.bf16.msra.mxu0 0
    %1016 = vmatprep.subr.bf16.mxu0 0
    %1017 = vmatpush1.bf16.msra.mxu0 0
    %1018 = vmatprep.subr.bf16.mxu0 0
    %1019 = vmatpush1.bf16.msra.mxu0 0
    %1020 = vmatprep.subr.bf16.mxu0 0
    %1021 = vmatpush1.bf16.msra.mxu0 0
    %1022 = vmatprep.subr.bf16.mxu0 0
    %1023 = vmatpush1.bf16.msra.mxu0 0
    %1024 = vmatprep.subr.bf16.mxu0 0
    %1025 = vmatpush1.bf16.msra.mxu0 0
    %1026 = vmatprep.subr.bf16.mxu0 0
    %1027 = vmatpush1.bf16.msra.mxu0 0
    %1028 = vmatprep.subr.bf16.mxu0 0
    %1029 = vmatpush1.bf16.msra.mxu0 0
    %1030 = vmatprep.subr.bf16.mxu0 0
    %1031 = vmatpush1.bf16.msra.mxu0 0
    %1032 = vmatprep.subr.bf16.mxu0 0
    %1033 = vmatpush1.bf16.msra.mxu0 0
    %1034 = vmatprep.subr.bf16.mxu0 0
    %1035 = vmatpush1.bf16.msra.mxu0 0
    %1036 = vmatprep.subr.bf16.mxu0 0
    %1037 = vmatpush1.bf16.msra.mxu0 0
    %1038 = vmatprep.mubr.bf16.mxu0 0
    %1039 = vmatmul.mubr.bf16.gmra.mrb[0].mxu0 %v1004
    %v1040 = vpop.f32.mrb[0].mxu0
    %v1041 = vadd.f32 0.0, %v1040
    %v1042 = vpop.f32.mrb[0].mxu0
    %v1043 = vpop.f32.mrb[0].mxu0
    %v1044 = vadd.f32 0.0, %v1043
    %v1045 = vpop.f32.mrb[0].mxu0
    %1046 = vdwg.mxu0
    %v1047 = vadd.f32 %v867, %v1041
    %v1048 = vadd.f32 %v868, %v1044
    %v1049 = vlaneseq
    %v1050 = vshrl.u32 %v1049, 7
    %v1051 = vsub.s32 3, %v1050
    %v1052 = vrot.slane %v99, %v1051
    %v1053 = vadd.f32 %v1047, %v1052
    %v1054 = vadd.f32 %v1048, %v1052
    %v1055 = vadd.f32 %v1053, %v47
    %v1056 = vadd.f32 %v1054, %v48
    %1057 = vadd.xlane.f32.xlu0 %v1055
    %v1058 = vpop.xlane.xlu0 %1057
    %1059 = vadd.xlane.f32.xlu0 %v1056
    %v1060 = vpop.xlane.xlu0 %1059
    %v1061 = vrcp.pop 128.0
    %v1062 = vmul.f32 %v1058, %v1061
    %v1063 = vmul.f32 %v1060, %v1061
    %v1064 = vsub.f32 %v1055, %v1062
    %v1065 = vsub.f32 %v1056, %v1063
    %v1066 = vmul.f32 %v1064, %v1064
    %v1067 = vmul.f32 %v1065, %v1065
    %1068 = vadd.xlane.f32.xlu0 %v1066
    %v1069 = vpop.xlane.xlu0 %1068
    %1070 = vadd.xlane.f32.xlu0 %v1067
    %v1071 = vpop.xlane.xlu0 %1070
    %v1072 = vmul.f32 %v1069, %v1061
    %v1073 = vmul.f32 %v1071, %v1061
    %v1074 = vadd.f32 %v1072, 1e-05
    %v1075 = vadd.f32 %v1073, 1e-05
    %v1076 = vrsqrt.pop %v1074
    %v1077 = vrsqrt.pop %v1075
    %v1078 = vmul.f32 %v1064, %v1076
    %v1079 = vmul.f32 %v1065, %v1077
    %v1080 = vlaneseq
    %v1081 = vshrl.u32 %v1080, 7
    %v1082 = vsub.s32 4, %v1081
    %v1083 = vrot.slane %v99, %v1082
    %v1084 = vmul.f32 %v1078, %v1083
    %v1085 = vmul.f32 %v1079, %v1083
    %v1086 = vlaneseq
    %v1087 = vshrl.u32 %v1086, 7
    %v1088 = vsub.s32 5, %v1087
    %v1089 = vrot.slane %v99, %v1088
    %v1090 = vadd.f32 %v1084, %v1089
    %v1091 = vadd.f32 %v1085, %v1089
    %v1092 = vpack.c.bf16 %v1091, %v1090
    %v1093 = vlaneseq
    %v1094 = vshrl.u32 %v1093, 7
    %v1095 = vsub.s32 6, %v1094
    %v1096 = vrot.slane %v99, %v1095
    %v1113 = vunpack.c.l.b16 %v53
    %v1114 = vunpack.c.l.b16 %v56
    %v1115 = vunpack.c.l.b16 %v59
    %v1116 = vunpack.c.l.b16 %v62
    %v1117 = vunpack.c.l.b16 %v65
    %v1118 = vunpack.c.l.b16 %v68
    %v1119 = vunpack.c.l.b16 %v71
    %v1120 = vunpack.c.l.b16 %v74
    %v1121 = vunpack.c.l.b16 %v77
    %v1122 = vunpack.c.l.b16 %v80
    %v1123 = vunpack.c.l.b16 %v83
    %v1124 = vunpack.c.l.b16 %v86
    %v1125 = vunpack.c.l.b16 %v89
    %v1126 = vunpack.c.l.b16 %v92
    %v1127 = vunpack.c.l.b16 %v95
    %v1128 = vunpack.c.l.b16 %v98
    %v1129 = vpack.c.b16 %v1114, %v1113
    %v1130 = vpack.c.b16 %v1116, %v1115
    %v1131 = vpack.c.b16 %v1118, %v1117
    %v1132 = vpack.c.b16 %v1120, %v1119
    %v1133 = vpack.c.b16 %v1122, %v1121
    %v1134 = vpack.c.b16 %v1124, %v1123
    %v1135 = vpack.c.b16 %v1126, %v1125
    %v1136 = vpack.c.b16 %v1128, %v1127
    %1145 = vmatprep.subr.bf16.mxu0 0
    %1146 = vmatpush1.bf16.msra.mxu0 %v1129
    %1147 = vmatprep.subr.bf16.mxu0 0
    %1148 = vmatpush1.bf16.msra.mxu0 %v1130
    %1149 = vmatprep.subr.bf16.mxu0 0
    %1150 = vmatpush1.bf16.msra.mxu0 %v1131
    %1151 = vmatprep.subr.bf16.mxu0 0
    %1152 = vmatpush1.bf16.msra.mxu0 %v1132
    %1153 = vmatprep.subr.bf16.mxu0 0
    %1154 = vmatpush1.bf16.msra.mxu0 %v1133
    %1155 = vmatprep.subr.bf16.mxu0 0
    %1156 = vmatpush1.bf16.msra.mxu0 %v1134
    %1157 = vmatprep.subr.bf16.mxu0 0
    %1158 = vmatpush1.bf16.msra.mxu0 %v1135
    %1159 = vmatprep.subr.bf16.mxu0 0
    %1160 = vmatpush1.bf16.msra.mxu0 %v1136
    %1161 = vmatprep.subr.bf16.mxu0 0
    %1162 = vmatpush1.bf16.msra.mxu0 0
    %1163 = vmatprep.subr.bf16.mxu0 0
    %1164 = vmatpush1.bf16.msra.mxu0 0
    %1165 = vmatprep.subr.bf16.mxu0 0
    %1166 = vmatpush1.bf16.msra.mxu0 0
    %1167 = vmatprep.subr.bf16.mxu0 0
    %1168 = vmatpush1.bf16.msra.mxu0 0
    %1169 = vmatprep.subr.bf16.mxu0 0
    %1170 = vmatpush1.bf16.msra.mxu0 0
    %1171 = vmatprep.subr.bf16.mxu0 0
    %1172 = vmatpush1.bf16.msra.mxu0 0
    %1173 = vmatprep.subr.bf16.mxu0 0
    %1174 = vmatpush1.bf16.msra.mxu0 0
    %1175 = vmatprep.subr.bf16.mxu0 0
    %1176 = vmatpush1.bf16.msra.mxu0 0
    %1177 = vmatprep.mubr.bf16.mxu0 0
    %1178 = vmatmul.mubr.bf16.gmra.mrb[0].mxu0 %v1092
    %v1179 = vpop.f32.mrb[0].mxu0
    %v1180 = vadd.f32 %v1096, %v1179
    %v1181 = vpop.f32.mrb[0].mxu0
    %v1182 = vpop.f32.mrb[0].mxu0
    %v1183 = vadd.f32 %v1096, %v1182
    %v1184 = vpop.f32.mrb[0].mxu0
    %1185 = vdwg.mxu0
    %v1186 = vmax.f32 %v1180, 0.0
    %v1187 = vmax.f32 %v1183, 0.0
    %v1188 = vpack.c.bf16 %v1187, %v1186
    %v1189 = vlaneseq
    %v1190 = vshrl.u32 %v1189, 7
    %v1191 = vsub.s32 7, %v1190
    %v1192 = vrot.slane %v99, %v1191
    %v1193 = vunpack.c.h.b16 %v53
    %v1194 = vunpack.c.h.b16 %v56
    %v1195 = vunpack.c.h.b16 %v59
    %v1196 = vunpack.c.h.b16 %v62
    %v1197 = vunpack.c.h.b16 %v65
    %v1198 = vunpack.c.h.b16 %v68
    %v1199 = vunpack.c.h.b16 %v71
    %v1200 = vunpack.c.h.b16 %v74
    %v1201 = vunpack.c.h.b16 %v77
    %v1202 = vunpack.c.h.b16 %v80
    %v1203 = vunpack.c.h.b16 %v83
    %v1204 = vunpack.c.h.b16 %v86
    %v1205 = vunpack.c.h.b16 %v89
    %v1206 = vunpack.c.h.b16 %v92
    %v1207 = vunpack.c.h.b16 %v95
    %v1208 = vunpack.c.h.b16 %v98
    %v1209 = vpack.c.b16 %v1194, %v1193
    %v1210 = vpack.c.b16 %v1196, %v1195
    %v1211 = vpack.c.b16 %v1198, %v1197
    %v1212 = vpack.c.b16 %v1200, %v1199
    %v1213 = vpack.c.b16 %v1202, %v1201
    %v1214 = vpack.c.b16 %v1204, %v1203
    %v1215 = vpack.c.b16 %v1206, %v1205
    %v1216 = vpack.c.b16 %v1208, %v1207
    %1225 = vmatprep.subr.bf16.mxu0 0
    %1226 = vmatpush1.bf16.msra.mxu0 %v1209
    %1227 = vmatprep.subr.bf16.mxu0 0
    %1228 = vmatpush1.bf16.msra.mxu0 %v1210
    %1229 = vmatprep.subr.bf16.mxu0 0
    %1230 = vmatpush1.bf16.msra.mxu0 %v1211
    %1231 = vmatprep.subr.bf16.mxu0 0
    %1232 = vmatpush1.bf16.msra.mxu0 %v1212
    %1233 = vmatprep.subr.bf16.mxu0 0
    %1234 = vmatpush1.bf16.msra.mxu0 %v1213
    %1235 = vmatprep.subr.bf16.mxu0 0
    %1236 = vmatpush1.bf16.msra.mxu0 %v1214
    %1237 = vmatprep.subr.bf16.mxu0 0
    %1238 = vmatpush1.bf16.msra.mxu0 %v1215
    %1239 = vmatprep.subr.bf16.mxu0 0
    %1240 = vmatpush1.bf16.msra.mxu0 %v1216
    %1241 = vmatprep.subr.bf16.mxu0 0
    %1242 = vmatpush1.bf16.msra.mxu0 0
    %1243 = vmatprep.subr.bf16.mxu0 0
    %1244 = vmatpush1.bf16.msra.mxu0 0
    %1245 = vmatprep.subr.bf16.mxu0 0
    %1246 = vmatpush1.bf16.msra.mxu0 0
    %1247 = vmatprep.subr.bf16.mxu0 0
    %1248 = vmatpush1.bf16.msra.mxu0 0
    %1249 = vmatprep.subr.bf16.mxu0 0
    %1250 = vmatpush1.bf16.msra.mxu0 0
    %1251 = vmatprep.subr.bf16.mxu0 0
    %1252 = vmatpush1.bf16.msra.mxu0 0
    %1253 = vmatprep.subr.bf16.mxu0 0
    %1254 = vmatpush1.bf16.msra.mxu0 0
    %1255 = vmatprep.subr.bf16.mxu0 0
    %1256 = vmatpush1.bf16.msra.mxu0 0
    %1257 = vmatprep.mubr.bf16.mxu0 0
    %1258 = vmatmul.mubr.bf16.gmra.mrb[0].mxu0 %v1188
    %v1259 = vpop.f32.mrb[0].mxu0
    %v1260 = vadd.f32 %v1192, %v1259
    %v1261 = vpop.f32.mrb[0].mxu0
    %v1262 = vpop.f32.mrb[0].mxu0
    %v1263 = vadd.f32 %v1192, %v1262
    %v1264 = vpop.f32.mrb[0].mxu0
    %1265 = vdwg.mxu0
    %v1266 = vadd.f32 %v1260, %v47
    %v1267 = vadd.f32 %v1263, %v48
    %1268 = vadd.xlane.f32.xlu0 %v1266
    %v1269 = vpop.xlane.xlu0 %1268
    %1270 = vadd.xlane.f32.xlu0 %v1267
    %v1271 = vpop.xlane.xlu0 %1270
    %v1272 = vmul.f32 %v1269, %v1061
    %v1273 = vmul.f32 %v1271, %v1061
    %v1274 = vsub.f32 %v1266, %v1272
    %v1275 = vsub.f32 %v1267, %v1273
    %v1276 = vmul.f32 %v1274, %v1274
    %v1277 = vmul.f32 %v1275, %v1275
    %1278 = vadd.xlane.f32.xlu0 %v1276
    %v1279 = vpop.xlane.xlu0 %1278
    %1280 = vadd.xlane.f32.xlu0 %v1277
    %v1281 = vpop.xlane.xlu0 %1280
    %v1282 = vmul.f32 %v1279, %v1061
    %v1283 = vmul.f32 %v1281, %v1061
    %v1284 = vadd.f32 %v1282, 1e-05
    %v1285 = vadd.f32 %v1283, 1e-05
    %v1286 = vrsqrt.pop %v1284
    %v1287 = vrsqrt.pop %v1285
    %v1288 = vmul.f32 %v1274, %v1286
    %v1289 = vmul.f32 %v1275, %v1287
    %v1290 = vlaneseq
    %v1291 = vshrl.u32 %v1290, 7
    %v1292 = vsub.s32 0, %v1291
    %v1293 = vrot.slane %v100, %v1292
    %v1294 = vmul.f32 %v1288, %v1293
    %v1295 = vmul.f32 %v1289, %v1293
    %v1296 = vlaneseq
    %v1297 = vshrl.u32 %v1296, 7
    %v1298 = vsub.s32 1, %v1297
    %v1299 = vrot.slane %v100, %v1298
    %v1300 = vadd.f32 %v1294, %v1299
    %v1301 = vadd.f32 %v1295, %v1299
    %1302 = vst [vmem:[#allocation7] sm:$0xff] %v1300
    %1303 = vst [vmem:[#allocation7 + $0x8] sm:$0xff] %v1301
    // Predicated region
    $region26: #{tpu_custom_call.1} parent=1 // pred_check
      _
    $region27: #{tpu_custom_call.1} parent=1 // pred_check_branch
      %1305 = sbr.rel (0) target = $region29
    $region28: #{tpu_custom_call.1} parent=1 // pred_region
      %s1307 = ssub.s32 256, 256
      %1308 = vsyncadd [#allocation4], %s1307
      %s1309 = sshll.u32 [#allocation7], 4
      %s1310 = int_to_ptr.vmem [resolvable:$true] %s1309
      %1315 = dma.vmem_to_hbm [thread:$0]  %s1310, 256, %s4, [#allocation4], 128, 128, 8
    $region29: #{tpu_custom_call.1} parent=1 // pred_fallthru
      _
    // Predicated region
    $region30: #{tpu_custom_call.1} parent=1 // pred_check
      _
    $region31: #{tpu_custom_call.1} parent=1 // pred_check_branch
      %1317 = sbr.rel (0) target = $region33
    $region32: #{tpu_custom_call.1} parent=1 // pred_region
      %1318 = dma.done [#allocation4], 256
    $region33: #{tpu_custom_call.1} parent=1 // pred_fallthru
      _
    %1319 = vsyncpa [#allocation3], 1
    %1320 = vsyncpa [#allocation6], 1
    %1321 = vsyncpa [#allocation4], 1

</llo_original>
